<compile_context>
chip_gen: v7x
topology: tpu7x:2x2x1
jax: 0.10.0
libtpu: 0.0.40
codegen_flags: <defaults>
</compile_context>

<pallas_src>
import functools

import jax
import jax.numpy as jnp
from jax.experimental import pallas as pl
from jax.experimental.pallas import tpu as pltpu


def _round_up(n: int, m: int) -> int:
    return ((n + m - 1) // m) * m


def _cdiv(a: int, b: int) -> int:
    return (a + b - 1) // b


def _sublane_multiple(dtype) -> int:
    # Minimum second-minor tile multiple per dtype (f32: 8, bf16: 16, int8: 32).
    return {4: 8, 2: 16, 1: 32}.get(jnp.dtype(dtype).itemsize, 8)


def _vmem_capacity_bytes() -> int:
    try:
        info = pltpu.get_tpu_info()
        cap = getattr(info, "vmem_capacity_bytes", None)
        if cap:
            return int(cap)
    except Exception:
        pass
    return 64 << 20  # conservative (v7x-sized) fallback


def _pick_tile(batch: int, tile_b: int, sublane: int):
    """Batch tile that (a) is a multiple of the dtype sublane minimum, (b) does
    not overshoot-pad awkward batch sizes, and (c) yields >=2 grid steps when
    possible so both v7x TensorCores get work (negligible cost on v5e/v6e)."""
    n_tiles = max(1, _cdiv(batch, max(int(tile_b), sublane)))
    if n_tiles < 2 and _round_up(batch, sublane) >= 2 * sublane:
        n_tiles = 2
    tile = max(sublane, _round_up(_cdiv(batch, n_tiles), sublane))
    bpad = _round_up(batch, tile)
    return tile, bpad


# ---------------------------------------------------------------------------
# Kernels
# ---------------------------------------------------------------------------

def _gdcn_resident_kernel(x_ref, wf_ref, b_ref, o_ref, *, cn_layers, dp, mxu_dtype):
    """All layer weights resident in VMEM; statically unrolled layer loop.

    x_ref : (TB, Dp)        current batch tile
    wf_ref: (L, Dp, 2*Dp)   fused [W^T | Wg^T] per layer, (in, out) layout
    b_ref : (L, 1, Dp)      f32 bias
    o_ref : (TB, Dp)
    """
    x0 = x_ref[...].astype(jnp.float32)
    x = x0
    # cn_layers is small (typically 3); static unroll keeps the scheduler fully
    # informed.  TODO(synk): switch to lax.fori_loop(..., unroll=True) if
    # cn_layers ever grows large enough to blow up live ranges / compile time.
    for i in range(cn_layers):
        # One fused MXU matmul per layer: (TB, Dp) @ (Dp, 2Dp) -> f32 acc.
        xp = jnp.dot(x.astype(mxu_dtype), wf_ref[i],
                     preferred_element_type=jnp.float32)
        xw = xp[:, :dp]
        xg = jax.nn.sigmoid(xp[:, dp:])           # exp on EUP, f32 elementwise
        x = x0 * (xw + b_ref[i]) * xg + x         # VPU, f32
    o_ref[...] = x.astype(o_ref.dtype)


def _gdcn_streamed_kernel(x_ref, wf_ref, b_ref, o_ref, x0_acc, x_acc,
                          *, dp, mxu_dtype):
    """Layer-streamed variant: grid=(batch_tiles, L); one layer's weights/step.

    Weight residency drops from L*Dp*2Dp to Dp*2Dp (double-buffered); the next
    layer's weight DMA overlaps the current layer's matmul.  x0 and the running
    x are carried across layer steps in f32 VMEM scratch.
    """
    l = pl.program_id(1)
    last = pl.num_programs(1) - 1

    @pl.when(l == 0)
    def _():
        x0_new = x_ref[...].astype(jnp.float32)
        x0_acc[...] = x0_new
        x_acc[...] = x0_new

    x0 = x0_acc[...]
    x = x_acc[...]
    xp = jnp.dot(x.astype(mxu_dtype), wf_ref[...],     # (Dp, 2Dp) — leading dim squeezed
                 preferred_element_type=jnp.float32)
    xw = xp[:, :dp]
    xg = jax.nn.sigmoid(xp[:, dp:])
    x_new = x0 * (xw + b_ref[...]) * xg + x            # b_ref is (1, Dp)

    @pl.when(l < last)
    def _():
        x_acc[...] = x_new

    @pl.when(l == last)
    def _():
        o_ref[...] = x_new.astype(o_ref.dtype)


# ---------------------------------------------------------------------------
# Parameter preparation (hoist out of the hot path for static weights)
# ---------------------------------------------------------------------------

def prepare_gate_cross_params(w, wg, b, *, mxu_dtype=jnp.bfloat16):
    """Transpose PyTorch (out, in) Linear weights to (in, out), fuse W|Wg along
    the output axis, zero-pad the feature dim to a lane-dense multiple of 128
    and cast to the MXU feed dtype.  Call ONCE for static weights and reuse.

    Returns (wf, bias): wf (L, Dp, 2*Dp) in mxu_dtype, bias (L, 1, Dp) f32.
    """
    L, D, _ = w.shape
    dp = max(128, _round_up(D, 128))
    w_t = jnp.swapaxes(w, -1, -2)
    wg_t = jnp.swapaxes(wg, -1, -2)
    pad = dp - D
    if pad:
        w_t = jnp.pad(w_t, ((0, 0), (0, pad), (0, pad)))
        wg_t = jnp.pad(wg_t, ((0, 0), (0, pad), (0, pad)))
        b = jnp.pad(b, ((0, 0), (0, pad)))
    wf = jnp.concatenate([w_t, wg_t], axis=-1).astype(mxu_dtype)   # (L, Dp, 2*Dp)
    bias = b.astype(jnp.float32).reshape(L, 1, dp)                 # (L, 1, Dp)
    return wf, bias


# ---------------------------------------------------------------------------
# pallas_call builders
# ---------------------------------------------------------------------------

def _resident_call(x, wf, bias, *, tile, bpad, dp, L, mxu_dtype, vmem_limit):
    kernel = functools.partial(
        _gdcn_resident_kernel, cn_layers=L, dp=dp, mxu_dtype=mxu_dtype)

    def build(weight_mode):
        kw = {} if weight_mode is None else {"pipeline_mode": weight_mode}
        return pl.pallas_call(
            kernel,
            out_shape=jax.ShapeDtypeStruct((bpad, dp), x.dtype),
            grid_spec=pltpu.PrefetchScalarGridSpec(
                num_scalar_prefetch=0,
                grid=(bpad // tile,),
                in_specs=[
                    pl.BlockSpec((tile, dp), lambda i: (i, 0)),            # x tile
                    pl.BlockSpec((L, dp, 2 * dp), lambda i: (0, 0, 0), **kw),  # fused W|Wg
                    pl.BlockSpec((L, 1, dp), lambda i: (0, 0, 0), **kw),       # bias
                ],
                out_specs=pl.BlockSpec((tile, dp), lambda i: (i, 0)),
            ),
            compiler_params=pltpu.CompilerParams(
                dimension_semantics=("parallel",),
                vmem_limit_bytes=vmem_limit,
            ),
        )

    try:
        # Constant-index weights: single-buffer them (the block never changes),
        # halving the resident weight VMEM footprint.
        return build(pl.Buffered(1))(x, wf, bias)
    except Exception:
        # Fallback for Pallas builds that reject pipeline_mode here.
        return build(None)(x, wf, bias)


def _streamed_call(x, wf, bias, *, tile, bpad, dp, L, mxu_dtype, vmem_limit):
    kernel = functools.partial(_gdcn_streamed_kernel, dp=dp, mxu_dtype=mxu_dtype)
    return pl.pallas_call(
        kernel,
        out_shape=jax.ShapeDtypeStruct((bpad, dp), x.dtype),
        grid_spec=pltpu.PrefetchScalarGridSpec(
            num_scalar_prefetch=0,
            grid=(bpad // tile, L),
            in_specs=[
                pl.BlockSpec((tile, dp), lambda i, l: (i, 0)),             # x tile
                pl.BlockSpec((None, dp, 2 * dp), lambda i, l: (l, 0, 0)),  # layer l W|Wg
                pl.BlockSpec((None, 1, dp), lambda i, l: (l, 0, 0)),       # layer l bias
            ],
            out_specs=pl.BlockSpec((tile, dp), lambda i, l: (i, 0)),
            scratch_shapes=[pltpu.VMEM((tile, dp), jnp.float32),   # x0
                            pltpu.VMEM((tile, dp), jnp.float32)],  # running x
        ),
        compiler_params=pltpu.CompilerParams(
            dimension_semantics=("parallel", "arbitrary"),
            vmem_limit_bytes=vmem_limit,
        ),
    )(x, wf, bias)


# ---------------------------------------------------------------------------
# Public wrappers
# ---------------------------------------------------------------------------

def gate_cross_layer_fused(x, wf, bias, *, tile_b=256, stream_layers=None):
    """x: (B, D); wf: (L, Dp, 2*Dp) fused weights (from prepare_gate_cross_params);
    bias: (L, 1, Dp) f32.  Returns (B, D) in x.dtype."""
    B, D = x.shape
    L, dp, dp2 = wf.shape
    assert dp2 == 2 * dp
    mxu_dt = wf.dtype

    sublane = _sublane_multiple(x.dtype)
    tile, bpad = _pick_tile(B, tile_b, sublane)

    itemsize = jnp.dtype(x.dtype).itemsize
    wbytes = wf.size * wf.dtype.itemsize + bias.size * bias.dtype.itemsize
    layer_wbytes = wbytes // L

    # Generation-aware VMEM budget.
    cap = _vmem_capacity_bytes()
    ceiling = (cap * 7) // 8          # headroom: ~56 MiB on v7x, ~112 MiB on v5e/v6e
    resident_threshold = cap // 2     # ~32 MiB on v7x, ~64 MiB on v5e/v6e

    def footprint(t, resident, weight_buffers):
        io = 4 * t * dp * itemsize                      # in + out tiles, 2 buffers each
        tmp = 3 * t * dp * 4 + t * 2 * dp * 4           # f32 x0/x/x_new + fused matmul result
        if resident:
            return weight_buffers * wbytes + io + tmp
        return 2 * layer_wbytes + io + tmp + 2 * t * dp * 4   # 2-deep weights + 2 f32 scratch

    if stream_layers is None:
        stream_layers = footprint(tile, True, weight_buffers=1) > resident_threshold

    if stream_layers:
        # Fewer, larger batch tiles amortize the per-batch-tile re-streaming of
        # all L weights (and the ~0.35 us/grid-step overhead).
        tile, bpad = _pick_tile(B, max(int(tile_b), 512), sublane)

    # Limit sized assuming double-buffered weights (safe for the fallback path).
    est = footprint(tile, not stream_layers, weight_buffers=2)
    vmem_limit = int(min(max(est + est // 4 + (4 << 20), 16 << 20), ceiling))

    xp_in = x
    if bpad != B or dp != D:
        xp_in = jnp.pad(x, ((0, bpad - B), (0, dp - D)))

    if not stream_layers:
        out = _resident_call(xp_in, wf, bias, tile=tile, bpad=bpad, dp=dp, L=L,
                             mxu_dtype=mxu_dt, vmem_limit=vmem_limit)
    else:
        out = _streamed_call(xp_in, wf, bias, tile=tile, bpad=bpad, dp=dp, L=L,
                             mxu_dtype=mxu_dt, vmem_limit=vmem_limit)

    return out[:B, :D]


def gate_cross_layer(x, w, wg, b, *, tile_b=256, mxu_dtype=jnp.bfloat16,
                     stream_layers=None):
    """Convenience wrapper: fuses the PyTorch-layout params then runs the kernel.
    For static weights prefer calling prepare_gate_cross_params once and reusing
    gate_cross_layer_fused (avoids per-call transpose/pad/cast of 2*L*D^2 elems)."""
    wf, bias = prepare_gate_cross_params(w, wg, b, mxu_dtype=mxu_dtype)
    return gate_cross_layer_fused(x, wf, bias, tile_b=tile_b,
                                  stream_layers=stream_layers)


# ---------------------------------------------------------------------------
# Plain-JAX reference (matches the PyTorch module)
# ---------------------------------------------------------------------------

def gate_cross_layer_ref(x, w, wg, b, mxu_dtype=None):
    md = jnp.dtype(mxu_dtype) if mxu_dtype is not None else jnp.dtype(x.dtype)
    x0 = x.astype(jnp.float32)
    xc = x0
    for i in range(w.shape[0]):
        w_t = jnp.swapaxes(w[i], 0, 1).astype(md)
        wg_t = jnp.swapaxes(wg[i], 0, 1).astype(md)
        xw = jnp.dot(xc.astype(md), w_t, preferred_element_type=jnp.float32)
        xg = jax.nn.sigmoid(
            jnp.dot(xc.astype(md), wg_t, preferred_element_type=jnp.float32))
        xc = x0 * (xw + b[i].astype(jnp.float32)) * xg + xc
    return xc.astype(x.dtype)


if __name__ == "__main__":
    B, D, L = 16, 32, 3  # batch, input_dim, cn_layers

    key = jax.random.PRNGKey(0)
    kx, kw, kwg, kb = jax.random.split(key, 4)

    x = jax.random.normal(kx, (B, D), dtype=jnp.float32)

    # Parameter init mirroring PyTorch defaults:
    #   Linear weight ~ U(-1/sqrt(in), 1/sqrt(in)); b ~ U(0, 1) (init.uniform_)
    bound = 1.0 / (D ** 0.5)
    w = jax.random.uniform(kw, (L, D, D), minval=-bound, maxval=bound, dtype=jnp.float32)
    wg = jax.random.uniform(kwg, (L, D, D), minval=-bound, maxval=bound, dtype=jnp.float32)
    b = jax.random.uniform(kb, (L, D), minval=0.0, maxval=1.0, dtype=jnp.float32)

    ref_f32 = gate_cross_layer_ref(x, w, wg, b)
    ref_bf16 = gate_cross_layer_ref(x, w, wg, b, mxu_dtype=jnp.bfloat16)

    # Weight prep hoisted out of the hot path (done once for static weights).
    wf_bf16, bias = prepare_gate_cross_params(w, wg, b, mxu_dtype=jnp.bfloat16)
    wf_f32, _ = prepare_gate_cross_params(w, wg, b, mxu_dtype=jnp.float32)

    # 1) Default path: resident weights, bf16 MXU feed, f32 accumulation + gates.
    out = jax.block_until_ready(gate_cross_layer_fused(x, wf_bf16, bias))
    assert out.shape == (B, D)
    assert jnp.allclose(out, ref_bf16, atol=1e-2, rtol=1e-2), "bf16 resident mismatch"
    assert jnp.allclose(out, ref_f32, atol=1e-1, rtol=1e-1), "bf16 resident far from f32"

    # 2) Exact f32 MXU feed.
    out_f32 = jax.block_until_ready(gate_cross_layer_fused(x, wf_f32, bias))
    assert jnp.allclose(out_f32, ref_f32, atol=1e-5, rtol=1e-5), "f32 resident mismatch"

    # 3) Layer-streamed path (large D / tight VMEM budgets) — same math.
    out_s = jax.block_until_ready(
        gate_cross_layer_fused(x, wf_f32, bias, stream_layers=True))
    assert jnp.allclose(out_s, ref_f32, atol=1e-5, rtol=1e-5), "streamed kernel mismatch"

    # 4) Convenience wrapper (prep + kernel) matches the pre-fused path.
    out_c = jax.block_until_ready(gate_cross_layer(x, w, wg, b))
    assert jnp.allclose(out_c, out, atol=1e-6, rtol=1e-6), "wrapper mismatch"

    print("KERNEL_OK")
</pallas_src>

<mosaic_0001>
module attributes {stable_mosaic.version = 11 : i64} {
  func.func @_gdcn_resident_kernel(%arg0: i32, %arg1: memref<8x128xf32, #tpu.memory_space<vmem>>, %arg2: memref<3x128x256xbf16, #tpu.memory_space<vmem>>, %arg3: memref<3x1x128xf32, #tpu.memory_space<vmem>>, %arg4: memref<8x128xf32, #tpu.memory_space<vmem>>) attributes {dimension_semantics = [#tpu.dimension_semantics<parallel>], iteration_bounds = array<i64: 2>, scalar_prefetch = 0 : i64, scratch_operands = 0 : i64, tpu.core_type = #tpu.core_type<tc>, window_params = [{transform_indices = @transform_0, window_bounds = array<i64: 8, 128>}, {pipeline_mode = #tpu.pipeline_mode<synchronous>, transform_indices = @transform_1, window_bounds = array<i64: 3, 128, 256>}, {pipeline_mode = #tpu.pipeline_mode<synchronous>, transform_indices = @transform_2, window_bounds = array<i64: 3, 1, 128>}, {transform_indices = @transform_3, window_bounds = array<i64: 8, 128>}]} {
    %c0 = arith.constant 0 : index
    %c0_0 = arith.constant 0 : index
    %0 = vector.load %arg1[%c0, %c0_0] : memref<8x128xf32, #tpu.memory_space<vmem>>, vector<8x128xf32>
    %1 = arith.truncf %0 : vector<8x128xf32> to vector<8x128xbf16>
    %c0_1 = arith.constant 0 : index
    %c0_2 = arith.constant 0 : index
    %c0_3 = arith.constant 0 : index
    %2 = vector.load %arg2[%c0_1, %c0_2, %c0_3] : memref<3x128x256xbf16, #tpu.memory_space<vmem>>, vector<1x128x256xbf16>
    %3 = vector.shape_cast %2 : vector<1x128x256xbf16> to vector<128x256xbf16>
    %cst = arith.constant dense<0.000000e+00> : vector<8x256xf32>
    %4 = tpu.matmul %1, %3, %cst {dimension_numbers = #tpu.dot_dimension_numbers<[1], [0], [0], [1], [0, 0, 1, 1], [], []>} : vector<8x128xbf16>, vector<128x256xbf16>, vector<8x256xf32> -> vector<8x256xf32>
    %5 = vector.extract_strided_slice %4 {offsets = [0, 0], sizes = [8, 128], strides = [1, 1]} : vector<8x256xf32> to vector<8x128xf32>
    %6 = vector.extract_strided_slice %4 {offsets = [0, 128], sizes = [8, 128], strides = [1, 1]} : vector<8x256xf32> to vector<8x128xf32>
    %7 = arith.negf %6 : vector<8x128xf32>
    %8 = math.exp %7 : vector<8x128xf32>
    %cst_4 = arith.constant 1.000000e+00 : f32
    %9 = vector.broadcast %cst_4 : f32 to vector<8x128xf32>
    %10 = arith.addf %9, %8 : vector<8x128xf32>
    %11 = arith.divf %9, %10 : vector<8x128xf32>
    %c0_5 = arith.constant 0 : index
    %c0_6 = arith.constant 0 : index
    %c0_7 = arith.constant 0 : index
    %12 = vector.load %arg3[%c0_5, %c0_6, %c0_7] : memref<3x1x128xf32, #tpu.memory_space<vmem>>, vector<1x1x128xf32>
    %13 = vector.shape_cast %12 : vector<1x1x128xf32> to vector<1x128xf32>
    %14 = vector.broadcast %13 : vector<1x128xf32> to vector<8x128xf32>
    %15 = arith.addf %5, %14 : vector<8x128xf32>
    %16 = arith.mulf %0, %15 : vector<8x128xf32>
    %17 = arith.mulf %16, %11 : vector<8x128xf32>
    %18 = arith.addf %17, %0 : vector<8x128xf32>
    %19 = arith.truncf %18 : vector<8x128xf32> to vector<8x128xbf16>
    %c1 = arith.constant 1 : index
    %c0_8 = arith.constant 0 : index
    %c0_9 = arith.constant 0 : index
    %20 = vector.load %arg2[%c1, %c0_8, %c0_9] : memref<3x128x256xbf16, #tpu.memory_space<vmem>>, vector<1x128x256xbf16>
    %21 = vector.shape_cast %20 : vector<1x128x256xbf16> to vector<128x256xbf16>
    %cst_10 = arith.constant dense<0.000000e+00> : vector<8x256xf32>
    %22 = tpu.matmul %19, %21, %cst_10 {dimension_numbers = #tpu.dot_dimension_numbers<[1], [0], [0], [1], [0, 0, 1, 1], [], []>} : vector<8x128xbf16>, vector<128x256xbf16>, vector<8x256xf32> -> vector<8x256xf32>
    %23 = vector.extract_strided_slice %22 {offsets = [0, 0], sizes = [8, 128], strides = [1, 1]} : vector<8x256xf32> to vector<8x128xf32>
    %24 = vector.extract_strided_slice %22 {offsets = [0, 128], sizes = [8, 128], strides = [1, 1]} : vector<8x256xf32> to vector<8x128xf32>
    %25 = arith.negf %24 : vector<8x128xf32>
    %26 = math.exp %25 : vector<8x128xf32>
    %cst_11 = arith.constant 1.000000e+00 : f32
    %27 = vector.broadcast %cst_11 : f32 to vector<8x128xf32>
    %28 = arith.addf %27, %26 : vector<8x128xf32>
    %29 = arith.divf %27, %28 : vector<8x128xf32>
    %c1_12 = arith.constant 1 : index
    %c0_13 = arith.constant 0 : index
    %c0_14 = arith.constant 0 : index
    %30 = vector.load %arg3[%c1_12, %c0_13, %c0_14] : memref<3x1x128xf32, #tpu.memory_space<vmem>>, vector<1x1x128xf32>
    %31 = vector.shape_cast %30 : vector<1x1x128xf32> to vector<1x128xf32>
    %32 = vector.broadcast %31 : vector<1x128xf32> to vector<8x128xf32>
    %33 = arith.addf %23, %32 : vector<8x128xf32>
    %34 = arith.mulf %0, %33 : vector<8x128xf32>
    %35 = arith.mulf %34, %29 : vector<8x128xf32>
    %36 = arith.addf %35, %18 : vector<8x128xf32>
    %37 = arith.truncf %36 : vector<8x128xf32> to vector<8x128xbf16>
    %c2 = arith.constant 2 : index
    %c0_15 = arith.constant 0 : index
    %c0_16 = arith.constant 0 : index
    %38 = vector.load %arg2[%c2, %c0_15, %c0_16] : memref<3x128x256xbf16, #tpu.memory_space<vmem>>, vector<1x128x256xbf16>
    %39 = vector.shape_cast %38 : vector<1x128x256xbf16> to vector<128x256xbf16>
    %cst_17 = arith.constant dense<0.000000e+00> : vector<8x256xf32>
    %40 = tpu.matmul %37, %39, %cst_17 {dimension_numbers = #tpu.dot_dimension_numbers<[1], [0], [0], [1], [0, 0, 1, 1], [], []>} : vector<8x128xbf16>, vector<128x256xbf16>, vector<8x256xf32> -> vector<8x256xf32>
    %41 = vector.extract_strided_slice %40 {offsets = [0, 0], sizes = [8, 128], strides = [1, 1]} : vector<8x256xf32> to vector<8x128xf32>
    %42 = vector.extract_strided_slice %40 {offsets = [0, 128], sizes = [8, 128], strides = [1, 1]} : vector<8x256xf32> to vector<8x128xf32>
    %43 = arith.negf %42 : vector<8x128xf32>
    %44 = math.exp %43 : vector<8x128xf32>
    %cst_18 = arith.constant 1.000000e+00 : f32
    %45 = vector.broadcast %cst_18 : f32 to vector<8x128xf32>
    %46 = arith.addf %45, %44 : vector<8x128xf32>
    %47 = arith.divf %45, %46 : vector<8x128xf32>
    %c2_19 = arith.constant 2 : index
    %c0_20 = arith.constant 0 : index
    %c0_21 = arith.constant 0 : index
    %48 = vector.load %arg3[%c2_19, %c0_20, %c0_21] : memref<3x1x128xf32, #tpu.memory_space<vmem>>, vector<1x1x128xf32>
    %49 = vector.shape_cast %48 : vector<1x1x128xf32> to vector<1x128xf32>
    %50 = vector.broadcast %49 : vector<1x128xf32> to vector<8x128xf32>
    %51 = arith.addf %41, %50 : vector<8x128xf32>
    %52 = arith.mulf %0, %51 : vector<8x128xf32>
    %53 = arith.mulf %52, %47 : vector<8x128xf32>
    %54 = arith.addf %53, %36 : vector<8x128xf32>
    %c0_22 = arith.constant 0 : index
    %c0_23 = arith.constant 0 : index
    %55 = vector.load %arg4[%c0_22, %c0_23] : memref<8x128xf32, #tpu.memory_space<vmem>>, vector<8x128xf32>
    tpu.vector_store %arg4[%c0_22, %c0_23], %54 {strides = array<i32>} : memref<8x128xf32, #tpu.memory_space<vmem>>, vector<8x128xf32>,
    return
  }
  func.func @transform_0(%arg0: i32) -> (i32, i32) {
    %c0_i32 = arith.constant 0 : i32
    %c0_i32_0 = arith.constant 0 : i32
    return %arg0, %c0_i32 : i32, i32
  }
  func.func @transform_1(%arg0: i32) -> (i32, i32, i32) {
    %c0_i32 = arith.constant 0 : i32
    %c0_i32_0 = arith.constant 0 : i32
    %c0_i32_1 = arith.constant 0 : i32
    %c0_i32_2 = arith.constant 0 : i32
    return %c0_i32, %c0_i32_0, %c0_i32_1 : i32, i32, i32
  }
  func.func @transform_2(%arg0: i32) -> (i32, i32, i32) {
    %c0_i32 = arith.constant 0 : i32
    %c0_i32_0 = arith.constant 0 : i32
    %c0_i32_1 = arith.constant 0 : i32
    %c0_i32_2 = arith.constant 0 : i32
    return %c0_i32, %c0_i32_0, %c0_i32_1 : i32, i32, i32
  }
  func.func @transform_3(%arg0: i32) -> (i32, i32) {
    %c0_i32 = arith.constant 0 : i32
    %c0_i32_0 = arith.constant 0 : i32
    return %arg0, %c0_i32 : i32, i32
  }
}

module attributes {stable_mosaic.version = 11 : i64} {
  func.func @_gdcn_resident_kernel(%arg0: i32, %arg1: memref<8x128xf32, #tpu.memory_space<vmem>>, %arg2: memref<3x128x256xbf16, #tpu.memory_space<vmem>>, %arg3: memref<3x1x128xf32, #tpu.memory_space<vmem>>, %arg4: memref<8x128xf32, #tpu.memory_space<vmem>>) attributes {dimension_semantics = [#tpu.dimension_semantics<parallel>], iteration_bounds = array<i64: 2>, scalar_prefetch = 0 : i64, scratch_operands = 0 : i64, tpu.core_type = #tpu.core_type<tc>, window_params = [{transform_indices = @transform_0, window_bounds = array<i64: 8, 128>}, {pipeline_mode = #tpu.pipeline_mode<synchronous>, transform_indices = @transform_1, window_bounds = array<i64: 3, 128, 256>}, {pipeline_mode = #tpu.pipeline_mode<synchronous>, transform_indices = @transform_2, window_bounds = array<i64: 3, 1, 128>}, {transform_indices = @transform_3, window_bounds = array<i64: 8, 128>}]} {
    %c0 = arith.constant 0 : index
    %c0_0 = arith.constant 0 : index
    %0 = vector.load %arg1[%c0, %c0_0] : memref<8x128xf32, #tpu.memory_space<vmem>>, vector<8x128xf32>
    %1 = arith.truncf %0 : vector<8x128xf32> to vector<8x128xbf16>
    %c0_1 = arith.constant 0 : index
    %c0_2 = arith.constant 0 : index
    %c0_3 = arith.constant 0 : index
    %2 = vector.load %arg2[%c0_1, %c0_2, %c0_3] : memref<3x128x256xbf16, #tpu.memory_space<vmem>>, vector<1x128x256xbf16>
    %3 = vector.shape_cast %2 : vector<1x128x256xbf16> to vector<128x256xbf16>
    %cst = arith.constant dense<0.000000e+00> : vector<8x256xf32>
    %4 = tpu.matmul %1, %3, %cst {dimension_numbers = #tpu.dot_dimension_numbers<[1], [0], [0], [1], [0, 0, 1, 1], [], []>} : vector<8x128xbf16>, vector<128x256xbf16>, vector<8x256xf32> -> vector<8x256xf32>
    %5 = vector.extract_strided_slice %4 {offsets = [0, 0], sizes = [8, 128], strides = [1, 1]} : vector<8x256xf32> to vector<8x128xf32>
    %6 = vector.extract_strided_slice %4 {offsets = [0, 128], sizes = [8, 128], strides = [1, 1]} : vector<8x256xf32> to vector<8x128xf32>
    %7 = arith.negf %6 : vector<8x128xf32>
    %8 = math.exp %7 : vector<8x128xf32>
    %cst_4 = arith.constant 1.000000e+00 : f32
    %9 = vector.broadcast %cst_4 : f32 to vector<8x128xf32>
    %10 = arith.addf %9, %8 : vector<8x128xf32>
    %11 = arith.divf %9, %10 : vector<8x128xf32>
    %c0_5 = arith.constant 0 : index
    %c0_6 = arith.constant 0 : index
    %c0_7 = arith.constant 0 : index
    %12 = vector.load %arg3[%c0_5, %c0_6, %c0_7] : memref<3x1x128xf32, #tpu.memory_space<vmem>>, vector<1x1x128xf32>
    %13 = vector.shape_cast %12 : vector<1x1x128xf32> to vector<1x128xf32>
    %14 = vector.broadcast %13 : vector<1x128xf32> to vector<8x128xf32>
    %15 = arith.addf %5, %14 : vector<8x128xf32>
    %16 = arith.mulf %0, %15 : vector<8x128xf32>
    %17 = arith.mulf %16, %11 : vector<8x128xf32>
    %18 = arith.addf %17, %0 : vector<8x128xf32>
    %19 = arith.truncf %18 : vector<8x128xf32> to vector<8x128xbf16>
    %c1 = arith.constant 1 : index
    %c0_8 = arith.constant 0 : index
    %c0_9 = arith.constant 0 : index
    %20 = vector.load %arg2[%c1, %c0_8, %c0_9] : memref<3x128x256xbf16, #tpu.memory_space<vmem>>, vector<1x128x256xbf16>
    %21 = vector.shape_cast %20 : vector<1x128x256xbf16> to vector<128x256xbf16>
    %cst_10 = arith.constant dense<0.000000e+00> : vector<8x256xf32>
    %22 = tpu.matmul %19, %21, %cst_10 {dimension_numbers = #tpu.dot_dimension_numbers<[1], [0], [0], [1], [0, 0, 1, 1], [], []>} : vector<8x128xbf16>, vector<128x256xbf16>, vector<8x256xf32> -> vector<8x256xf32>
    %23 = vector.extract_strided_slice %22 {offsets = [0, 0], sizes = [8, 128], strides = [1, 1]} : vector<8x256xf32> to vector<8x128xf32>
    %24 = vector.extract_strided_slice %22 {offsets = [0, 128], sizes = [8, 128], strides = [1, 1]} : vector<8x256xf32> to vector<8x128xf32>
    %25 = arith.negf %24 : vector<8x128xf32>
    %26 = math.exp %25 : vector<8x128xf32>
    %cst_11 = arith.constant 1.000000e+00 : f32
    %27 = vector.broadcast %cst_11 : f32 to vector<8x128xf32>
    %28 = arith.addf %27, %26 : vector<8x128xf32>
    %29 = arith.divf %27, %28 : vector<8x128xf32>
    %c1_12 = arith.constant 1 : index
    %c0_13 = arith.constant 0 : index
    %c0_14 = arith.constant 0 : index
    %30 = vector.load %arg3[%c1_12, %c0_13, %c0_14] : memref<3x1x128xf32, #tpu.memory_space<vmem>>, vector<1x1x128xf32>
    %31 = vector.shape_cast %30 : vector<1x1x128xf32> to vector<1x128xf32>
    %32 = vector.broadcast %31 : vector<1x128xf32> to vector<8x128xf32>
    %33 = arith.addf %23, %32 : vector<8x128xf32>
    %34 = arith.mulf %0, %33 : vector<8x128xf32>
    %35 = arith.mulf %34, %29 : vector<8x128xf32>
    %36 = arith.addf %35, %18 : vector<8x128xf32>
    %37 = arith.truncf %36 : vector<8x128xf32> to vector<8x128xbf16>
    %c2 = arith.constant 2 : index
    %c0_15 = arith.constant 0 : index
    %c0_16 = arith.constant 0 : index
    %38 = vector.load %arg2[%c2, %c0_15, %c0_16] : memref<3x128x256xbf16, #tpu.memory_space<vmem>>, vector<1x128x256xbf16>
    %39 = vector.shape_cast %38 : vector<1x128x256xbf16> to vector<128x256xbf16>
    %cst_17 = arith.constant dense<0.000000e+00> : vector<8x256xf32>
    %40 = tpu.matmul %37, %39, %cst_17 {dimension_numbers = #tpu.dot_dimension_numbers<[1], [0], [0], [1], [0, 0, 1, 1], [], []>} : vector<8x128xbf16>, vector<128x256xbf16>, vector<8x256xf32> -> vector<8x256xf32>
    %41 = vector.extract_strided_slice %40 {offsets = [0, 0], sizes = [8, 128], strides = [1, 1]} : vector<8x256xf32> to vector<8x128xf32>
    %42 = vector.extract_strided_slice %40 {offsets = [0, 128], sizes = [8, 128], strides = [1, 1]} : vector<8x256xf32> to vector<8x128xf32>
    %43 = arith.negf %42 : vector<8x128xf32>
    %44 = math.exp %43 : vector<8x128xf32>
    %cst_18 = arith.constant 1.000000e+00 : f32
    %45 = vector.broadcast %cst_18 : f32 to vector<8x128xf32>
    %46 = arith.addf %45, %44 : vector<8x128xf32>
    %47 = arith.divf %45, %46 : vector<8x128xf32>
    %c2_19 = arith.constant 2 : index
    %c0_20 = arith.constant 0 : index
    %c0_21 = arith.constant 0 : index
    %48 = vector.load %arg3[%c2_19, %c0_20, %c0_21] : memref<3x1x128xf32, #tpu.memory_space<vmem>>, vector<1x1x128xf32>
    %49 = vector.shape_cast %48 : vector<1x1x128xf32> to vector<1x128xf32>
    %50 = vector.broadcast %49 : vector<1x128xf32> to vector<8x128xf32>
    %51 = arith.addf %41, %50 : vector<8x128xf32>
    %52 = arith.mulf %0, %51 : vector<8x128xf32>
    %53 = arith.mulf %52, %47 : vector<8x128xf32>
    %54 = arith.addf %53, %36 : vector<8x128xf32>
    %c0_22 = arith.constant 0 : index
    %c0_23 = arith.constant 0 : index
    %55 = vector.load %arg4[%c0_22, %c0_23] : memref<8x128xf32, #tpu.memory_space<vmem>>, vector<8x128xf32>
    tpu.vector_store %arg4[%c0_22, %c0_23], %54 {strides = array<i32>} : memref<8x128xf32, #tpu.memory_space<vmem>>, vector<8x128xf32>,
    return
  }
  func.func @transform_0(%arg0: i32) -> (i32, i32) {
    %c0_i32 = arith.constant 0 : i32
    %c0_i32_0 = arith.constant 0 : i32
    return %arg0, %c0_i32 : i32, i32
  }
  func.func @transform_1(%arg0: i32) -> (i32, i32, i32) {
    %c0_i32 = arith.constant 0 : i32
    %c0_i32_0 = arith.constant 0 : i32
    %c0_i32_1 = arith.constant 0 : i32
    %c0_i32_2 = arith.constant 0 : i32
    return %c0_i32, %c0_i32_0, %c0_i32_1 : i32, i32, i32
  }
  func.func @transform_2(%arg0: i32) -> (i32, i32, i32) {
    %c0_i32 = arith.constant 0 : i32
    %c0_i32_0 = arith.constant 0 : i32
    %c0_i32_1 = arith.constant 0 : i32
    %c0_i32_2 = arith.constant 0 : i32
    return %c0_i32, %c0_i32_0, %c0_i32_1 : i32, i32, i32
  }
  func.func @transform_3(%arg0: i32) -> (i32, i32) {
    %c0_i32 = arith.constant 0 : i32
    %c0_i32_0 = arith.constant 0 : i32
    return %arg0, %c0_i32 : i32, i32
  }
}

</mosaic_0001>

<llo_original>
// kernel: tpu_custom_call.1
$region0: #{tpu_custom_call.1}
  #allocation0 [shape = 'u32[]', space=smem, size = 0x4, offset = 0x4, fixed_abs, tag = 'smem constant byte address 0x4 - core index']
  #allocation1 [shape = 'u32[144,128]{1,0:T(1,128)}', space=vmem, size = 0x12000, scoped, tag = 'internal scratch']
  %s0 = inlined_call_operand.hbm [shape: f32[16,128], index: 0, kind: input, shape index: {}]
  %s1 = inlined_call_operand.hbm [shape: bf16[3,128,256], index: 1, kind: input, shape index: {}]
  %s2 = inlined_call_operand.vmem [shape: f32[3,1,128], index: 2, kind: input, shape index: {}]
  %s3 = inlined_call_operand.hbm [shape: f32[16,128], index: 3, kind: output, shape index: {}]
  %s4 = sld [smem:[#allocation0]]
  $region53: #{tpu_custom_call.1} parent=0
    _
  %s6 = ssub.s32 1, %s4
  %s7 = scalar_select 0, %s6, %s4
  $region1: #{tpu_custom_call.1} parent=0
    #allocation2 [shape = 'u8[8192]{0}', space=vmem, size = 0x2000, scoped, tag = 'input window, operand 0']
    #allocation3 [shape = 's32[2]{0}', space=sflag, size = 0x8, scoped, tag = 'scoped memory for tpu_custom_call.1']
    #allocation4 [shape = 's32[2]{0}', space=sflag, size = 0x8, scoped, tag = 'scoped memory for tpu_custom_call.1']
    #allocation5 [shape = 'u8[196608]{0}', space=vmem, size = 0x30000, scoped, tag = 'input window, operand 1, single buffered']
    #allocation6 [shape = 's32[1]{0}', space=sflag, size = 0x4, scoped, tag = 'scoped memory for tpu_custom_call.1']
    #allocation7 [shape = 'u8[8192]{0}', space=vmem, size = 0x2000, scoped, tag = 'output window, operand 0']
    %8 = vsyncpa [#allocation3], 0
    %s9 = scalar_lea.sflag [#allocation3], 1
    %10 = vsyncpa %s9, 0
    %11 = vsyncpa [#allocation6], 0
    %12 = vsyncpa [#allocation4], 0
    %s13 = scalar_lea.sflag [#allocation4], 1
    %14 = vsyncpa %s13, 0
    loop: start=0, step=1, limit=4
    $region2: #{tpu_custom_call.1} parent=1 // loop_pre_header
      _
    $region3: #{tpu_custom_call.1} parent=1 // loop_header
      %s16 = sphi 0, %s20
      %p17 = scmp.ge.s32.totalorder %s16, 4
      %s26 = sphi 0, %s28
      %s29 = sphi 0, %s26
      %s30 = sphi 0, %s29
      %s46 = sphi 0, %s30
      %s50 = sphi 0, %s50
      %s52 = sphi 0, %s50
      %s53 = sphi 0, %s52
      %s67 = sphi 0, %s53
      %s71 = sphi 0, %s71
      %s73 = sphi 0, %s71
      %s74 = sphi 0, %s73
      %s88 = sphi 0, %s74
      %s94 = sphi 0, %s96
      %s97 = sphi 0, %s94
      %s98 = sphi 0, %s97
      %s114 = sphi 0, %s98
    $region4: #{tpu_custom_call.1} parent=1 // loop_header_branch
      %19 = sbr.rel (%p17) target = $region8
    $region5: #{tpu_custom_call.1} parent=1 // loop_body
      %s21 = ssub.s32 %s16, 1
      %s22 = ssub.s32 %s16, 2
      %s23 = sadd.s32 %s16, 1
      %s24 = ssub.s32 %s16, %s23
      %p25 = scmp.eq.s32.totalorder %s24, 0
      %s27 = sadd.s32 %s26, 1
      %s28 = scalar_select %p25, %s26, %s27
      %p31 = pneg %p25
      %p32 = scmp.eq.s32.totalorder %s16, 1
      %p33 = por %p31, %p32
      %p34 = scmp.ne.s32.totalorder %s26, %s29
      %p35 = scmp.eq.s32.totalorder %s16, 0
      %p36 = por %p34, %p35
      %p37 = scmp.ne.s32.totalorder %s26, %s29
      %p38 = scmp.eq.s32.totalorder %s21, 1
      %p39 = por %p37, %p38
      %p40 = scmp.ne.s32.totalorder %s29, %s30
      %p41 = scmp.eq.s32.totalorder %s21, 0
      %p42 = por %p40, %p41
      %p43 = scmp.ne.s32.totalorder %s29, %s30
      %p44 = scmp.eq.s32.totalorder %s22, 1
      %p45 = por %p43, %p44
      %p47 = scmp.ne.s32.totalorder %s30, %s46
      %p48 = scmp.eq.s32.totalorder %s22, 0
      %p49 = por %p47, %p48
      %s51 = sadd.s32 %s50, 1
      %p54 = scmp.eq.s32.totalorder %s16, 1
      %p55 = scmp.ne.s32.totalorder %s50, %s52
      %p56 = scmp.eq.s32.totalorder %s16, 0
      %p57 = por %p55, %p56
      %p58 = scmp.ne.s32.totalorder %s50, %s52
      %p59 = scmp.eq.s32.totalorder %s21, 1
      %p60 = por %p58, %p59
      %p61 = scmp.ne.s32.totalorder %s52, %s53
      %p62 = scmp.eq.s32.totalorder %s21, 0
      %p63 = por %p61, %p62
      %p64 = scmp.ne.s32.totalorder %s52, %s53
      %p65 = scmp.eq.s32.totalorder %s22, 1
      %p66 = por %p64, %p65
      %p68 = scmp.ne.s32.totalorder %s53, %s67
      %p69 = scmp.eq.s32.totalorder %s22, 0
      %p70 = por %p68, %p69
      %s72 = sadd.s32 %s71, 1
      %p75 = scmp.eq.s32.totalorder %s16, 1
      %p76 = scmp.ne.s32.totalorder %s71, %s73
      %p77 = scmp.eq.s32.totalorder %s16, 0
      %p78 = por %p76, %p77
      %p79 = scmp.ne.s32.totalorder %s71, %s73
      %p80 = scmp.eq.s32.totalorder %s21, 1
      %p81 = por %p79, %p80
      %p82 = scmp.ne.s32.totalorder %s73, %s74
      %p83 = scmp.eq.s32.totalorder %s21, 0
      %p84 = por %p82, %p83
      %p85 = scmp.ne.s32.totalorder %s73, %s74
      %p86 = scmp.eq.s32.totalorder %s22, 1
      %p87 = por %p85, %p86
      %p89 = scmp.ne.s32.totalorder %s74, %s88
      %p90 = scmp.eq.s32.totalorder %s22, 0
      %p91 = por %p89, %p90
      %s92 = ssub.s32 %s16, %s23
      %p93 = scmp.eq.s32.totalorder %s92, 0
      %s95 = sadd.s32 %s94, 1
      %s96 = scalar_select %p93, %s94, %s95
      %p99 = pneg %p93
      %p100 = scmp.eq.s32.totalorder %s16, 1
      %p101 = por %p99, %p100
      %p102 = scmp.ne.s32.totalorder %s94, %s97
      %p103 = scmp.eq.s32.totalorder %s16, 0
      %p104 = por %p102, %p103
      %p105 = scmp.ne.s32.totalorder %s94, %s97
      %p106 = scmp.eq.s32.totalorder %s21, 1
      %p107 = por %p105, %p106
      %p108 = scmp.ne.s32.totalorder %s97, %s98
      %p109 = scmp.eq.s32.totalorder %s21, 0
      %p110 = por %p108, %p109
      %p111 = scmp.ne.s32.totalorder %s97, %s98
      %p112 = scmp.eq.s32.totalorder %s22, 1
      %p113 = por %p111, %p112
      %p115 = scmp.ne.s32.totalorder %s98, %s114
      %p116 = scmp.eq.s32.totalorder %s22, 0
      %p117 = por %p115, %p116
      %p118 = scmp.le.s32.totalorder 1, %s16
      %p119 = scmp.lt.s32.totalorder %s16, 3
      %p120 = pnand %p118, %p119
      %p121 = pneg %p120
      // Predicated region
      $region9: #{tpu_custom_call.1} parent=5 // pred_check
        _
      $region10: #{tpu_custom_call.1} parent=5 // pred_check_branch
        %123 = sbr.rel (%p120) target = $region12
      $region11: #{tpu_custom_call.1} parent=5 // pred_region
        %s124 = ssub.s32 %s16, 1
        // Predicated region
        $region13: #{tpu_custom_call.1} parent=11 // pred_check
          %p125 = pneg %p63
        $region14: #{tpu_custom_call.1} parent=11 // pred_check_branch
          %127 = sbr.rel (%p125) target = $region16
        $region15: #{tpu_custom_call.1} parent=11 // pred_region
          %s129 = ssub.s32 6144, 6144
          %130 = vsyncadd [#allocation6], %s129
          %s131 = sshll.u32 [#allocation5], 4
          %s132 = int_to_ptr.vmem [resolvable:$true] %s131
          %137 = dma.hbm_to_vmem [thread:$0]  %s1, 6144, %s132, [#allocation6], 128, 128, 8
        $region16: #{tpu_custom_call.1} parent=11 // pred_fallthru
          _
        // Predicated region
        $region17: #{tpu_custom_call.1} parent=11 // pred_check
          %p138 = pneg %p84
        $region18: #{tpu_custom_call.1} parent=11 // pred_check_branch
          %140 = sbr.rel (%p138) target = $region20
        $region19: #{tpu_custom_call.1} parent=11 // pred_region
          _
        $region20: #{tpu_custom_call.1} parent=11 // pred_fallthru
          _
      $region12: #{tpu_custom_call.1} parent=5 // pred_fallthru
        _
      %p141 = scmp.lt.s32.totalorder %s16, 2
      // Predicated region
      $region21: #{tpu_custom_call.1} parent=5 // pred_check
        %p142 = pneg %p141
      $region22: #{tpu_custom_call.1} parent=5 // pred_check_branch
        %144 = sbr.rel (%p142) target = $region24
      $region23: #{tpu_custom_call.1} parent=5 // pred_region
        // Predicated region
        $region25: #{tpu_custom_call.1} parent=23 // pred_check
          %p145 = pneg %p36
        $region26: #{tpu_custom_call.1} parent=23 // pred_check_branch
          %147 = sbr.rel (%p145) target = $region28
        $region27: #{tpu_custom_call.1} parent=23 // pred_region
          %s148 = sand.u32 %s26, 1
          %s149 = scalar_lea.sflag [#allocation3], %s148
          %s150 = sand.u32 %s26, 1
          %s151 = smul.addr %s150, 8
          %s152 = scalar_lea.vmem [#allocation2], %s151
          %s154 = ssub.s32 128, 128
          %155 = vsyncadd %s149, %s154
          %s156 = smul.addr %s16, 128
          %s157 = scalar_lea.hbm %s0, %s156
          %s159 = sshll.u32 %s152, 4
          %s160 = int_to_ptr.vmem [resolvable:$true] %s159
          %162 = dma.hbm_to_vmem [thread:$0]  %s157, 128, %s160, %s149
        $region28: #{tpu_custom_call.1} parent=23 // pred_fallthru
          _
      $region24: #{tpu_custom_call.1} parent=5 // pred_fallthru
        _
      %p163 = scmp.le.s32.totalorder 1, %s16
      %p164 = scmp.lt.s32.totalorder %s16, 3
      %p165 = pnand %p163, %p164
      %p166 = pneg %p165
      // Predicated region
      $region29: #{tpu_custom_call.1} parent=5 // pred_check
        _
      $region30: #{tpu_custom_call.1} parent=5 // pred_check_branch
        %168 = sbr.rel (%p165) target = $region32
      $region31: #{tpu_custom_call.1} parent=5 // pred_region
        %s169 = ssub.s32 %s16, 1
        %s170 = sand.u32 %s29, 1
        %s171 = scalar_lea.sflag [#allocation3], %s170
        %s172 = sand.u32 %s29, 1
        %s173 = smul.addr %s172, 8
        %s174 = scalar_lea.vmem [#allocation2], %s173
        // Predicated region
        $region33: #{tpu_custom_call.1} parent=31 // pred_check
          %p175 = pneg %p42
        $region34: #{tpu_custom_call.1} parent=31 // pred_check_branch
          %177 = sbr.rel (%p175) target = $region36
        $region35: #{tpu_custom_call.1} parent=31 // pred_region
          %178 = dma.done %s171, 128
        $region36: #{tpu_custom_call.1} parent=31 // pred_fallthru
          _
        // Predicated region
        $region37: #{tpu_custom_call.1} parent=31 // pred_check
          %p179 = pneg %p63
        $region38: #{tpu_custom_call.1} parent=31 // pred_check_branch
          %181 = sbr.rel (%p179) target = $region40
        $region39: #{tpu_custom_call.1} parent=31 // pred_region
          %182 = dma.done [#allocation6], 6144
        $region40: #{tpu_custom_call.1} parent=31 // pred_fallthru
          _
        %s183 = sand.u32 %s29, 1
        %s184 = scalar_lea.sflag [#allocation3], %s183
        %s185 = sand.u32 %s29, 1
        %s186 = smul.addr %s185, 8
        %s187 = scalar_lea.vmem [#allocation2], %s186
        %p188 = pneg %p42
        %p189 = pneg %p39
        %p190 = pneg %p63
        %p191 = pneg %p60
        %p192 = pneg %p84
        %p193 = pneg %p81
        %p194 = pneg %p110
        %p195 = pneg %p107
        %s196 = sand.u32 %s97, 1
        %s197 = scalar_lea.sflag [#allocation4], %s196
        %s198 = sand.u32 %s97, 1
        %s199 = smul.addr %s198, 8
        %s200 = scalar_lea.vmem [#allocation7], %s199
        %v202 = vld [vmem:[%s174] sm:$0xff]
        %v203 = vpack.c.bf16 %v202, %v202
        %v204 = vld [vmem:[#allocation5] sm:$0xff]
        %v205 = vld [vmem:[#allocation5 + $0x8] sm:$0xff]
        %v206 = vld [vmem:[#allocation5 + $0x10] sm:$0xff]
        %v207 = vld [vmem:[#allocation5 + $0x18] sm:$0xff]
        %v208 = vld [vmem:[#allocation5 + $0x20] sm:$0xff]
        %v209 = vld [vmem:[#allocation5 + $0x28] sm:$0xff]
        %v210 = vld [vmem:[#allocation5 + $0x30] sm:$0xff]
        %v211 = vld [vmem:[#allocation5 + $0x38] sm:$0xff]
        %v212 = vld [vmem:[#allocation5 + $0x40] sm:$0xff]
        %v213 = vld [vmem:[#allocation5 + $0x48] sm:$0xff]
        %v214 = vld [vmem:[#allocation5 + $0x50] sm:$0xff]
        %v215 = vld [vmem:[#allocation5 + $0x58] sm:$0xff]
        %v216 = vld [vmem:[#allocation5 + $0x60] sm:$0xff]
        %v217 = vld [vmem:[#allocation5 + $0x68] sm:$0xff]
        %v218 = vld [vmem:[#allocation5 + $0x70] sm:$0xff]
        %v219 = vld [vmem:[#allocation5 + $0x78] sm:$0xff]
        %v236 = vunpack.c.l.b16 %v204
        %v237 = vunpack.c.h.b16 %v204
        %v238 = vunpack.c.l.b16 %v205
        %v239 = vunpack.c.h.b16 %v205
        %v240 = vunpack.c.l.b16 %v206
        %v241 = vunpack.c.h.b16 %v206
        %v242 = vunpack.c.l.b16 %v207
        %v243 = vunpack.c.h.b16 %v207
        %v244 = vunpack.c.l.b16 %v208
        %v245 = vunpack.c.h.b16 %v208
        %v246 = vunpack.c.l.b16 %v209
        %v247 = vunpack.c.h.b16 %v209
        %v248 = vunpack.c.l.b16 %v210
        %v249 = vunpack.c.h.b16 %v210
        %v250 = vunpack.c.l.b16 %v211
        %v251 = vunpack.c.h.b16 %v211
        %v252 = vunpack.c.l.b16 %v212
        %v253 = vunpack.c.h.b16 %v212
        %v254 = vunpack.c.l.b16 %v213
        %v255 = vunpack.c.h.b16 %v213
        %v256 = vunpack.c.l.b16 %v214
        %v257 = vunpack.c.h.b16 %v214
        %v258 = vunpack.c.l.b16 %v215
        %v259 = vunpack.c.h.b16 %v215
        %v260 = vunpack.c.l.b16 %v216
        %v261 = vunpack.c.h.b16 %v216
        %v262 = vunpack.c.l.b16 %v217
        %v263 = vunpack.c.h.b16 %v217
        %v264 = vunpack.c.l.b16 %v218
        %v265 = vunpack.c.h.b16 %v218
        %v266 = vunpack.c.l.b16 %v219
        %v267 = vunpack.c.h.b16 %v219
        %v268 = vpack.c.b16 %v238, %v236
        %v269 = vpack.c.b16 %v239, %v237
        %v270 = vpack.c.b16 %v242, %v240
        %v271 = vpack.c.b16 %v243, %v241
        %v272 = vpack.c.b16 %v246, %v244
        %v273 = vpack.c.b16 %v247, %v245
        %v274 = vpack.c.b16 %v250, %v248
        %v275 = vpack.c.b16 %v251, %v249
        %v276 = vpack.c.b16 %v254, %v252
        %v277 = vpack.c.b16 %v255, %v253
        %v278 = vpack.c.b16 %v258, %v256
        %v279 = vpack.c.b16 %v259, %v257
        %v280 = vpack.c.b16 %v262, %v260
        %v281 = vpack.c.b16 %v263, %v261
        %v282 = vpack.c.b16 %v266, %v264
        %v283 = vpack.c.b16 %v267, %v265
        %300 = vmatprep.subr.bf16.mxu0 %v269
        %301 = vmatpush1.bf16.msra.mxu0 %v268
        %302 = vmatprep.subr.bf16.mxu0 %v271
        %303 = vmatpush1.bf16.msra.mxu0 %v270
        %304 = vmatprep.subr.bf16.mxu0 %v273
        %305 = vmatpush1.bf16.msra.mxu0 %v272
        %306 = vmatprep.subr.bf16.mxu0 %v275
        %307 = vmatpush1.bf16.msra.mxu0 %v274
        %308 = vmatprep.subr.bf16.mxu0 %v277
        %309 = vmatpush1.bf16.msra.mxu0 %v276
        %310 = vmatprep.subr.bf16.mxu0 %v279
        %311 = vmatpush1.bf16.msra.mxu0 %v278
        %312 = vmatprep.subr.bf16.mxu0 %v281
        %313 = vmatpush1.bf16.msra.mxu0 %v280
        %314 = vmatprep.subr.bf16.mxu0 %v283
        %315 = vmatpush1.bf16.msra.mxu0 %v282
        %316 = vmatprep.subr.bf16.mxu0 0
        %317 = vmatpush1.bf16.msra.mxu0 0
        %318 = vmatprep.subr.bf16.mxu0 0
        %319 = vmatpush1.bf16.msra.mxu0 0
        %320 = vmatprep.subr.bf16.mxu0 0
        %321 = vmatpush1.bf16.msra.mxu0 0
        %322 = vmatprep.subr.bf16.mxu0 0
        %323 = vmatpush1.bf16.msra.mxu0 0
        %324 = vmatprep.subr.bf16.mxu0 0
        %325 = vmatpush1.bf16.msra.mxu0 0
        %326 = vmatprep.subr.bf16.mxu0 0
        %327 = vmatpush1.bf16.msra.mxu0 0
        %328 = vmatprep.subr.bf16.mxu0 0
        %329 = vmatpush1.bf16.msra.mxu0 0
        %330 = vmatprep.subr.bf16.mxu0 0
        %331 = vmatpush1.bf16.msra.mxu0 0
        %332 = vmatprep.mubr.bf16.mxu0 0
        %333 = vmatmul.mubr.bf16.gmra.mrb[0].mxu0 %v203
        %v334 = vpop.f32.mrb[0].mxu0
        %v335 = vadd.f32 0.0, %v334
        %v336 = vpop.f32.mrb[0].mxu0
        %v337 = vadd.f32 0.0, %v336
        %v338 = vpop.f32.mrb[0].mxu0
        %v339 = vpop.f32.mrb[0].mxu0
        %340 = vdwg.mxu0
        %v341 = vxor.u32 %v337, 2147483648
        %v342 = vmul.f32 %v341, 1.442695
        %v343 = vpow.pop %v342
        %v344 = vadd.f32 %v343, 1.0
        %v345 = vrcp.pop %v344
        %v346 = vmul.f32 1.0, %v345
        %v347 = vld [vmem:[%s2] sm:$0x1]
        %v349 = vlaneseq
        %v350 = vshrl.u32 %v349, 7
        %v351 = vsub.s32 0, %v350
        %v352 = vrot.slane %v347, %v351
        %v354 = vadd.f32 %v335, %v352
        %v355 = vmul.f32 %v202, %v354
        %v356 = vmul.f32 %v355, %v346
        %v357 = vadd.f32 %v356, %v202
        %v358 = vpack.c.bf16 %v357, %v357
        %s359 = scalar_lea.vmem [#allocation5], 128
        %v360 = vld [vmem:[%s359] sm:$0xff]
        %v361 = vld [vmem:[%s359 + $0x8] sm:$0xff]
        %v362 = vld [vmem:[%s359 + $0x10] sm:$0xff]
        %v363 = vld [vmem:[%s359 + $0x18] sm:$0xff]
        %v364 = vld [vmem:[%s359 + $0x20] sm:$0xff]
        %v365 = vld [vmem:[%s359 + $0x28] sm:$0xff]
        %v366 = vld [vmem:[%s359 + $0x30] sm:$0xff]
        %v367 = vld [vmem:[%s359 + $0x38] sm:$0xff]
        %v368 = vld [vmem:[%s359 + $0x40] sm:$0xff]
        %v369 = vld [vmem:[%s359 + $0x48] sm:$0xff]
        %v370 = vld [vmem:[%s359 + $0x50] sm:$0xff]
        %v371 = vld [vmem:[%s359 + $0x58] sm:$0xff]
        %v372 = vld [vmem:[%s359 + $0x60] sm:$0xff]
        %v373 = vld [vmem:[%s359 + $0x68] sm:$0xff]
        %v374 = vld [vmem:[%s359 + $0x70] sm:$0xff]
        %v375 = vld [vmem:[%s359 + $0x78] sm:$0xff]
        %v392 = vunpack.c.l.b16 %v360
        %v393 = vunpack.c.h.b16 %v360
        %v394 = vunpack.c.l.b16 %v361
        %v395 = vunpack.c.h.b16 %v361
        %v396 = vunpack.c.l.b16 %v362
        %v397 = vunpack.c.h.b16 %v362
        %v398 = vunpack.c.l.b16 %v363
        %v399 = vunpack.c.h.b16 %v363
        %v400 = vunpack.c.l.b16 %v364
        %v401 = vunpack.c.h.b16 %v364
        %v402 = vunpack.c.l.b16 %v365
        %v403 = vunpack.c.h.b16 %v365
        %v404 = vunpack.c.l.b16 %v366
        %v405 = vunpack.c.h.b16 %v366
        %v406 = vunpack.c.l.b16 %v367
        %v407 = vunpack.c.h.b16 %v367
        %v408 = vunpack.c.l.b16 %v368
        %v409 = vunpack.c.h.b16 %v368
        %v410 = vunpack.c.l.b16 %v369
        %v411 = vunpack.c.h.b16 %v369
        %v412 = vunpack.c.l.b16 %v370
        %v413 = vunpack.c.h.b16 %v370
        %v414 = vunpack.c.l.b16 %v371
        %v415 = vunpack.c.h.b16 %v371
        %v416 = vunpack.c.l.b16 %v372
        %v417 = vunpack.c.h.b16 %v372
        %v418 = vunpack.c.l.b16 %v373
        %v419 = vunpack.c.h.b16 %v373
        %v420 = vunpack.c.l.b16 %v374
        %v421 = vunpack.c.h.b16 %v374
        %v422 = vunpack.c.l.b16 %v375
        %v423 = vunpack.c.h.b16 %v375
        %v424 = vpack.c.b16 %v394, %v392
        %v425 = vpack.c.b16 %v395, %v393
        %v426 = vpack.c.b16 %v398, %v396
        %v427 = vpack.c.b16 %v399, %v397
        %v428 = vpack.c.b16 %v402, %v400
        %v429 = vpack.c.b16 %v403, %v401
        %v430 = vpack.c.b16 %v406, %v404
        %v431 = vpack.c.b16 %v407, %v405
        %v432 = vpack.c.b16 %v410, %v408
        %v433 = vpack.c.b16 %v411, %v409
        %v434 = vpack.c.b16 %v414, %v412
        %v435 = vpack.c.b16 %v415, %v413
        %v436 = vpack.c.b16 %v418, %v416
        %v437 = vpack.c.b16 %v419, %v417
        %v438 = vpack.c.b16 %v422, %v420
        %v439 = vpack.c.b16 %v423, %v421
        %456 = vmatprep.subr.bf16.mxu0 %v425
        %457 = vmatpush1.bf16.msra.mxu0 %v424
        %458 = vmatprep.subr.bf16.mxu0 %v427
        %459 = vmatpush1.bf16.msra.mxu0 %v426
        %460 = vmatprep.subr.bf16.mxu0 %v429
        %461 = vmatpush1.bf16.msra.mxu0 %v428
        %462 = vmatprep.subr.bf16.mxu0 %v431
        %463 = vmatpush1.bf16.msra.mxu0 %v430
        %464 = vmatprep.subr.bf16.mxu0 %v433
        %465 = vmatpush1.bf16.msra.mxu0 %v432
        %466 = vmatprep.subr.bf16.mxu0 %v435
        %467 = vmatpush1.bf16.msra.mxu0 %v434
        %468 = vmatprep.subr.bf16.mxu0 %v437
        %469 = vmatpush1.bf16.msra.mxu0 %v436
        %470 = vmatprep.subr.bf16.mxu0 %v439
        %471 = vmatpush1.bf16.msra.mxu0 %v438
        %472 = vmatprep.subr.bf16.mxu0 0
        %473 = vmatpush1.bf16.msra.mxu0 0
        %474 = vmatprep.subr.bf16.mxu0 0
        %475 = vmatpush1.bf16.msra.mxu0 0
        %476 = vmatprep.subr.bf16.mxu0 0
        %477 = vmatpush1.bf16.msra.mxu0 0
        %478 = vmatprep.subr.bf16.mxu0 0
        %479 = vmatpush1.bf16.msra.mxu0 0
        %480 = vmatprep.subr.bf16.mxu0 0
        %481 = vmatpush1.bf16.msra.mxu0 0
        %482 = vmatprep.subr.bf16.mxu0 0
        %483 = vmatpush1.bf16.msra.mxu0 0
        %484 = vmatprep.subr.bf16.mxu0 0
        %485 = vmatpush1.bf16.msra.mxu0 0
        %486 = vmatprep.subr.bf16.mxu0 0
        %487 = vmatpush1.bf16.msra.mxu0 0
        %488 = vmatprep.mubr.bf16.mxu0 0
        %489 = vmatmul.mubr.bf16.gmra.mrb[0].mxu0 %v358
        %v490 = vpop.f32.mrb[0].mxu0
        %v491 = vadd.f32 0.0, %v490
        %v492 = vpop.f32.mrb[0].mxu0
        %v493 = vadd.f32 0.0, %v492
        %v494 = vpop.f32.mrb[0].mxu0
        %v495 = vpop.f32.mrb[0].mxu0
        %496 = vdwg.mxu0
        %v497 = vxor.u32 %v493, 2147483648
        %v498 = vmul.f32 %v497, 1.442695
        %v499 = vpow.pop %v498
        %v500 = vadd.f32 %v499, 1.0
        %v501 = vrcp.pop %v500
        %v502 = vmul.f32 1.0, %v501
        %s503 = scalar_lea.vmem %s2, 1
        %v504 = vld [vmem:[%s503] sm:$0x1]
        %v506 = vlaneseq
        %v507 = vshrl.u32 %v506, 7
        %v508 = vsub.s32 0, %v507
        %v509 = vrot.slane %v504, %v508
        %v511 = vadd.f32 %v491, %v509
        %v512 = vmul.f32 %v202, %v511
        %v513 = vmul.f32 %v512, %v502
        %v514 = vadd.f32 %v513, %v357
        %v515 = vpack.c.bf16 %v514, %v514
        %s516 = scalar_lea.vmem [#allocation5], 256
        %v517 = vld [vmem:[%s516] sm:$0xff]
        %v518 = vld [vmem:[%s516 + $0x8] sm:$0xff]
        %v519 = vld [vmem:[%s516 + $0x10] sm:$0xff]
        %v520 = vld [vmem:[%s516 + $0x18] sm:$0xff]
        %v521 = vld [vmem:[%s516 + $0x20] sm:$0xff]
        %v522 = vld [vmem:[%s516 + $0x28] sm:$0xff]
        %v523 = vld [vmem:[%s516 + $0x30] sm:$0xff]
        %v524 = vld [vmem:[%s516 + $0x38] sm:$0xff]
        %v525 = vld [vmem:[%s516 + $0x40] sm:$0xff]
        %v526 = vld [vmem:[%s516 + $0x48] sm:$0xff]
        %v527 = vld [vmem:[%s516 + $0x50] sm:$0xff]
        %v528 = vld [vmem:[%s516 + $0x58] sm:$0xff]
        %v529 = vld [vmem:[%s516 + $0x60] sm:$0xff]
        %v530 = vld [vmem:[%s516 + $0x68] sm:$0xff]
        %v531 = vld [vmem:[%s516 + $0x70] sm:$0xff]
        %v532 = vld [vmem:[%s516 + $0x78] sm:$0xff]
        %v549 = vunpack.c.l.b16 %v517
        %v550 = vunpack.c.h.b16 %v517
        %v551 = vunpack.c.l.b16 %v518
        %v552 = vunpack.c.h.b16 %v518
        %v553 = vunpack.c.l.b16 %v519
        %v554 = vunpack.c.h.b16 %v519
        %v555 = vunpack.c.l.b16 %v520
        %v556 = vunpack.c.h.b16 %v520
        %v557 = vunpack.c.l.b16 %v521
        %v558 = vunpack.c.h.b16 %v521
        %v559 = vunpack.c.l.b16 %v522
        %v560 = vunpack.c.h.b16 %v522
        %v561 = vunpack.c.l.b16 %v523
        %v562 = vunpack.c.h.b16 %v523
        %v563 = vunpack.c.l.b16 %v524
        %v564 = vunpack.c.h.b16 %v524
        %v565 = vunpack.c.l.b16 %v525
        %v566 = vunpack.c.h.b16 %v525
        %v567 = vunpack.c.l.b16 %v526
        %v568 = vunpack.c.h.b16 %v526
        %v569 = vunpack.c.l.b16 %v527
        %v570 = vunpack.c.h.b16 %v527
        %v571 = vunpack.c.l.b16 %v528
        %v572 = vunpack.c.h.b16 %v528
        %v573 = vunpack.c.l.b16 %v529
        %v574 = vunpack.c.h.b16 %v529
        %v575 = vunpack.c.l.b16 %v530
        %v576 = vunpack.c.h.b16 %v530
        %v577 = vunpack.c.l.b16 %v531
        %v578 = vunpack.c.h.b16 %v531
        %v579 = vunpack.c.l.b16 %v532
        %v580 = vunpack.c.h.b16 %v532
        %v581 = vpack.c.b16 %v551, %v549
        %v582 = vpack.c.b16 %v552, %v550
        %v583 = vpack.c.b16 %v555, %v553
        %v584 = vpack.c.b16 %v556, %v554
        %v585 = vpack.c.b16 %v559, %v557
        %v586 = vpack.c.b16 %v560, %v558
        %v587 = vpack.c.b16 %v563, %v561
        %v588 = vpack.c.b16 %v564, %v562
        %v589 = vpack.c.b16 %v567, %v565
        %v590 = vpack.c.b16 %v568, %v566
        %v591 = vpack.c.b16 %v571, %v569
        %v592 = vpack.c.b16 %v572, %v570
        %v593 = vpack.c.b16 %v575, %v573
        %v594 = vpack.c.b16 %v576, %v574
        %v595 = vpack.c.b16 %v579, %v577
        %v596 = vpack.c.b16 %v580, %v578
        %613 = vmatprep.subr.bf16.mxu0 %v582
        %614 = vmatpush1.bf16.msra.mxu0 %v581
        %615 = vmatprep.subr.bf16.mxu0 %v584
        %616 = vmatpush1.bf16.msra.mxu0 %v583
        %617 = vmatprep.subr.bf16.mxu0 %v586
        %618 = vmatpush1.bf16.msra.mxu0 %v585
        %619 = vmatprep.subr.bf16.mxu0 %v588
        %620 = vmatpush1.bf16.msra.mxu0 %v587
        %621 = vmatprep.subr.bf16.mxu0 %v590
        %622 = vmatpush1.bf16.msra.mxu0 %v589
        %623 = vmatprep.subr.bf16.mxu0 %v592
        %624 = vmatpush1.bf16.msra.mxu0 %v591
        %625 = vmatprep.subr.bf16.mxu0 %v594
        %626 = vmatpush1.bf16.msra.mxu0 %v593
        %627 = vmatprep.subr.bf16.mxu0 %v596
        %628 = vmatpush1.bf16.msra.mxu0 %v595
        %629 = vmatprep.subr.bf16.mxu0 0
        %630 = vmatpush1.bf16.msra.mxu0 0
        %631 = vmatprep.subr.bf16.mxu0 0
        %632 = vmatpush1.bf16.msra.mxu0 0
        %633 = vmatprep.subr.bf16.mxu0 0
        %634 = vmatpush1.bf16.msra.mxu0 0
        %635 = vmatprep.subr.bf16.mxu0 0
        %636 = vmatpush1.bf16.msra.mxu0 0
        %637 = vmatprep.subr.bf16.mxu0 0
        %638 = vmatpush1.bf16.msra.mxu0 0
        %639 = vmatprep.subr.bf16.mxu0 0
        %640 = vmatpush1.bf16.msra.mxu0 0
        %641 = vmatprep.subr.bf16.mxu0 0
        %642 = vmatpush1.bf16.msra.mxu0 0
        %643 = vmatprep.subr.bf16.mxu0 0
        %644 = vmatpush1.bf16.msra.mxu0 0
        %645 = vmatprep.mubr.bf16.mxu0 0
        %646 = vmatmul.mubr.bf16.gmra.mrb[0].mxu0 %v515
        %v647 = vpop.f32.mrb[0].mxu0
        %v648 = vadd.f32 0.0, %v647
        %v649 = vpop.f32.mrb[0].mxu0
        %v650 = vadd.f32 0.0, %v649
        %v651 = vpop.f32.mrb[0].mxu0
        %v652 = vpop.f32.mrb[0].mxu0
        %653 = vdwg.mxu0
        %v654 = vxor.u32 %v650, 2147483648
        %v655 = vmul.f32 %v654, 1.442695
        %v656 = vpow.pop %v655
        %v657 = vadd.f32 %v656, 1.0
        %v658 = vrcp.pop %v657
        %v659 = vmul.f32 1.0, %v658
        %s660 = scalar_lea.vmem %s2, 2
        %v661 = vld [vmem:[%s660] sm:$0x1]
        %v663 = vlaneseq
        %v664 = vshrl.u32 %v663, 7
        %v665 = vsub.s32 0, %v664
        %v666 = vrot.slane %v661, %v665
        %v668 = vadd.f32 %v648, %v666
        %v669 = vmul.f32 %v202, %v668
        %v670 = vmul.f32 %v669, %v659
        %v671 = vadd.f32 %v670, %v514
        %672 = vst [vmem:[%s200] sm:$0xff] %v671
        %s673 = sand.u32 %s97, 1
        %s674 = scalar_lea.sflag [#allocation4], %s673
        %s675 = sand.u32 %s97, 1
        %s676 = smul.addr %s675, 8
        %s677 = scalar_lea.vmem [#allocation7], %s676
        // Predicated region
        $region41: #{tpu_custom_call.1} parent=31 // pred_check
          %p678 = pneg %p107
        $region42: #{tpu_custom_call.1} parent=31 // pred_check_branch
          %680 = sbr.rel (%p678) target = $region44
        $region43: #{tpu_custom_call.1} parent=31 // pred_region
          %s682 = ssub.s32 128, 128
          %683 = vsyncadd %s674, %s682
          %s684 = smul.addr %s21, 128
          %s685 = scalar_lea.hbm %s3, %s684
          %s687 = sshll.u32 %s677, 4
          %s688 = int_to_ptr.vmem [resolvable:$true] %s687
          %690 = dma.vmem_to_hbm [thread:$0]  %s688, 128, %s685, %s674
        $region44: #{tpu_custom_call.1} parent=31 // pred_fallthru
          _
      $region32: #{tpu_custom_call.1} parent=5 // pred_fallthru
        _
      %p691 = scmp.le.s32.totalorder 2, %s16
      // Predicated region
      $region45: #{tpu_custom_call.1} parent=5 // pred_check
        %p692 = pneg %p691
      $region46: #{tpu_custom_call.1} parent=5 // pred_check_branch
        %694 = sbr.rel (%p692) target = $region48
      $region47: #{tpu_custom_call.1} parent=5 // pred_region
        %s695 = ssub.s32 %s16, 2
        // Predicated region
        $region49: #{tpu_custom_call.1} parent=47 // pred_check
          %p696 = pneg %p113
        $region50: #{tpu_custom_call.1} parent=47 // pred_check_branch
          %698 = sbr.rel (%p696) target = $region52
        $region51: #{tpu_custom_call.1} parent=47 // pred_region
          %s699 = sand.u32 %s98, 1
          %s700 = scalar_lea.sflag [#allocation4], %s699
          %s701 = sand.u32 %s98, 1
          %s702 = smul.addr %s701, 8
          %s703 = scalar_lea.vmem [#allocation7], %s702
          %704 = dma.done %s700, 128
        $region52: #{tpu_custom_call.1} parent=47 // pred_fallthru
          _
      $region48: #{tpu_custom_call.1} parent=5 // pred_fallthru
        _
    $region6: #{tpu_custom_call.1} parent=1 // loop_footer
      %s20 = sadd.s32 1, %s16
    $region7: #{tpu_custom_call.1} parent=1 // loop_footer_branch
      %15 = sbr.rel target = $region3
    $region8: #{tpu_custom_call.1} parent=1 // loop_exit
      _
    %705 = vsyncpa [#allocation3], 1
    %s706 = scalar_lea.sflag [#allocation3], 1
    %707 = vsyncpa %s706, 1
    %708 = vsyncpa [#allocation6], 1
    %709 = vsyncpa [#allocation4], 1
    %s710 = scalar_lea.sflag [#allocation4], 1
    %711 = vsyncpa %s710, 1

// kernel: tpu_custom_call.1
$region0: #{tpu_custom_call.1}
  #allocation0 [shape = 'u32[]', space=smem, size = 0x4, offset = 0x4, fixed_abs, tag = 'smem constant byte address 0x4 - core index']
  #allocation1 [shape = 'u32[144,128]{1,0:T(1,128)}', space=vmem, size = 0x12000, scoped, tag = 'internal scratch']
  %s0 = inlined_call_operand.hbm [shape: f32[16,128], index: 0, kind: input, shape index: {}]
  %s1 = inlined_call_operand.hbm [shape: bf16[3,128,256], index: 1, kind: input, shape index: {}]
  %s2 = inlined_call_operand.vmem [shape: f32[3,1,128], index: 2, kind: input, shape index: {}]
  %s3 = inlined_call_operand.hbm [shape: f32[16,128], index: 3, kind: output, shape index: {}]
  %s4 = sld [smem:[#allocation0]]
  $region53: #{tpu_custom_call.1} parent=0
    _
  %s6 = ssub.s32 1, %s4
  %s7 = scalar_select 0, %s6, %s4
  $region1: #{tpu_custom_call.1} parent=0
    #allocation2 [shape = 'u8[8192]{0}', space=vmem, size = 0x2000, scoped, tag = 'input window, operand 0']
    #allocation3 [shape = 's32[2]{0}', space=sflag, size = 0x8, scoped, tag = 'scoped memory for tpu_custom_call.1']
    #allocation4 [shape = 's32[2]{0}', space=sflag, size = 0x8, scoped, tag = 'scoped memory for tpu_custom_call.1']
    #allocation5 [shape = 'u8[196608]{0}', space=vmem, size = 0x30000, scoped, tag = 'input window, operand 1, single buffered']
    #allocation6 [shape = 's32[1]{0}', space=sflag, size = 0x4, scoped, tag = 'scoped memory for tpu_custom_call.1']
    #allocation7 [shape = 'u8[8192]{0}', space=vmem, size = 0x2000, scoped, tag = 'output window, operand 0']
    %8 = vsyncpa [#allocation3], 0
    %s9 = scalar_lea.sflag [#allocation3], 1
    %10 = vsyncpa %s9, 0
    %11 = vsyncpa [#allocation6], 0
    %12 = vsyncpa [#allocation4], 0
    %s13 = scalar_lea.sflag [#allocation4], 1
    %14 = vsyncpa %s13, 0
    loop: start=0, step=1, limit=4
    $region2: #{tpu_custom_call.1} parent=1 // loop_pre_header
      _
    $region3: #{tpu_custom_call.1} parent=1 // loop_header
      %s16 = sphi 0, %s20
      %p17 = scmp.ge.s32.totalorder %s16, 4
      %s26 = sphi 0, %s28
      %s29 = sphi 0, %s26
      %s30 = sphi 0, %s29
      %s46 = sphi 0, %s30
      %s50 = sphi 0, %s50
      %s52 = sphi 0, %s50
      %s53 = sphi 0, %s52
      %s67 = sphi 0, %s53
      %s71 = sphi 0, %s71
      %s73 = sphi 0, %s71
      %s74 = sphi 0, %s73
      %s88 = sphi 0, %s74
      %s94 = sphi 0, %s96
      %s97 = sphi 0, %s94
      %s98 = sphi 0, %s97
      %s114 = sphi 0, %s98
    $region4: #{tpu_custom_call.1} parent=1 // loop_header_branch
      %19 = sbr.rel (%p17) target = $region8
    $region5: #{tpu_custom_call.1} parent=1 // loop_body
      %s21 = ssub.s32 %s16, 1
      %s22 = ssub.s32 %s16, 2
      %s23 = sadd.s32 %s16, 1
      %s24 = ssub.s32 %s16, %s23
      %p25 = scmp.eq.s32.totalorder %s24, 0
      %s27 = sadd.s32 %s26, 1
      %s28 = scalar_select %p25, %s26, %s27
      %p31 = pneg %p25
      %p32 = scmp.eq.s32.totalorder %s16, 1
      %p33 = por %p31, %p32
      %p34 = scmp.ne.s32.totalorder %s26, %s29
      %p35 = scmp.eq.s32.totalorder %s16, 0
      %p36 = por %p34, %p35
      %p37 = scmp.ne.s32.totalorder %s26, %s29
      %p38 = scmp.eq.s32.totalorder %s21, 1
      %p39 = por %p37, %p38
      %p40 = scmp.ne.s32.totalorder %s29, %s30
      %p41 = scmp.eq.s32.totalorder %s21, 0
      %p42 = por %p40, %p41
      %p43 = scmp.ne.s32.totalorder %s29, %s30
      %p44 = scmp.eq.s32.totalorder %s22, 1
      %p45 = por %p43, %p44
      %p47 = scmp.ne.s32.totalorder %s30, %s46
      %p48 = scmp.eq.s32.totalorder %s22, 0
      %p49 = por %p47, %p48
      %s51 = sadd.s32 %s50, 1
      %p54 = scmp.eq.s32.totalorder %s16, 1
      %p55 = scmp.ne.s32.totalorder %s50, %s52
      %p56 = scmp.eq.s32.totalorder %s16, 0
      %p57 = por %p55, %p56
      %p58 = scmp.ne.s32.totalorder %s50, %s52
      %p59 = scmp.eq.s32.totalorder %s21, 1
      %p60 = por %p58, %p59
      %p61 = scmp.ne.s32.totalorder %s52, %s53
      %p62 = scmp.eq.s32.totalorder %s21, 0
      %p63 = por %p61, %p62
      %p64 = scmp.ne.s32.totalorder %s52, %s53
      %p65 = scmp.eq.s32.totalorder %s22, 1
      %p66 = por %p64, %p65
      %p68 = scmp.ne.s32.totalorder %s53, %s67
      %p69 = scmp.eq.s32.totalorder %s22, 0
      %p70 = por %p68, %p69
      %s72 = sadd.s32 %s71, 1
      %p75 = scmp.eq.s32.totalorder %s16, 1
      %p76 = scmp.ne.s32.totalorder %s71, %s73
      %p77 = scmp.eq.s32.totalorder %s16, 0
      %p78 = por %p76, %p77
      %p79 = scmp.ne.s32.totalorder %s71, %s73
      %p80 = scmp.eq.s32.totalorder %s21, 1
      %p81 = por %p79, %p80
      %p82 = scmp.ne.s32.totalorder %s73, %s74
      %p83 = scmp.eq.s32.totalorder %s21, 0
      %p84 = por %p82, %p83
      %p85 = scmp.ne.s32.totalorder %s73, %s74
      %p86 = scmp.eq.s32.totalorder %s22, 1
      %p87 = por %p85, %p86
      %p89 = scmp.ne.s32.totalorder %s74, %s88
      %p90 = scmp.eq.s32.totalorder %s22, 0
      %p91 = por %p89, %p90
      %s92 = ssub.s32 %s16, %s23
      %p93 = scmp.eq.s32.totalorder %s92, 0
      %s95 = sadd.s32 %s94, 1
      %s96 = scalar_select %p93, %s94, %s95
      %p99 = pneg %p93
      %p100 = scmp.eq.s32.totalorder %s16, 1
      %p101 = por %p99, %p100
      %p102 = scmp.ne.s32.totalorder %s94, %s97
      %p103 = scmp.eq.s32.totalorder %s16, 0
      %p104 = por %p102, %p103
      %p105 = scmp.ne.s32.totalorder %s94, %s97
      %p106 = scmp.eq.s32.totalorder %s21, 1
      %p107 = por %p105, %p106
      %p108 = scmp.ne.s32.totalorder %s97, %s98
      %p109 = scmp.eq.s32.totalorder %s21, 0
      %p110 = por %p108, %p109
      %p111 = scmp.ne.s32.totalorder %s97, %s98
      %p112 = scmp.eq.s32.totalorder %s22, 1
      %p113 = por %p111, %p112
      %p115 = scmp.ne.s32.totalorder %s98, %s114
      %p116 = scmp.eq.s32.totalorder %s22, 0
      %p117 = por %p115, %p116
      %p118 = scmp.le.s32.totalorder 1, %s16
      %p119 = scmp.lt.s32.totalorder %s16, 3
      %p120 = pnand %p118, %p119
      %p121 = pneg %p120
      // Predicated region
      $region9: #{tpu_custom_call.1} parent=5 // pred_check
        _
      $region10: #{tpu_custom_call.1} parent=5 // pred_check_branch
        %123 = sbr.rel (%p120) target = $region12
      $region11: #{tpu_custom_call.1} parent=5 // pred_region
        %s124 = ssub.s32 %s16, 1
        // Predicated region
        $region13: #{tpu_custom_call.1} parent=11 // pred_check
          %p125 = pneg %p63
        $region14: #{tpu_custom_call.1} parent=11 // pred_check_branch
          %127 = sbr.rel (%p125) target = $region16
        $region15: #{tpu_custom_call.1} parent=11 // pred_region
          %s129 = ssub.s32 6144, 6144
          %130 = vsyncadd [#allocation6], %s129
          %s131 = sshll.u32 [#allocation5], 4
          %s132 = int_to_ptr.vmem [resolvable:$true] %s131
          %137 = dma.hbm_to_vmem [thread:$0]  %s1, 6144, %s132, [#allocation6], 128, 128, 8
        $region16: #{tpu_custom_call.1} parent=11 // pred_fallthru
          _
        // Predicated region
        $region17: #{tpu_custom_call.1} parent=11 // pred_check
          %p138 = pneg %p84
        $region18: #{tpu_custom_call.1} parent=11 // pred_check_branch
          %140 = sbr.rel (%p138) target = $region20
        $region19: #{tpu_custom_call.1} parent=11 // pred_region
          _
        $region20: #{tpu_custom_call.1} parent=11 // pred_fallthru
          _
      $region12: #{tpu_custom_call.1} parent=5 // pred_fallthru
        _
      %p141 = scmp.lt.s32.totalorder %s16, 2
      // Predicated region
      $region21: #{tpu_custom_call.1} parent=5 // pred_check
        %p142 = pneg %p141
      $region22: #{tpu_custom_call.1} parent=5 // pred_check_branch
        %144 = sbr.rel (%p142) target = $region24
      $region23: #{tpu_custom_call.1} parent=5 // pred_region
        // Predicated region
        $region25: #{tpu_custom_call.1} parent=23 // pred_check
          %p145 = pneg %p36
        $region26: #{tpu_custom_call.1} parent=23 // pred_check_branch
          %147 = sbr.rel (%p145) target = $region28
        $region27: #{tpu_custom_call.1} parent=23 // pred_region
          %s148 = sand.u32 %s26, 1
          %s149 = scalar_lea.sflag [#allocation3], %s148
          %s150 = sand.u32 %s26, 1
          %s151 = smul.addr %s150, 8
          %s152 = scalar_lea.vmem [#allocation2], %s151
          %s154 = ssub.s32 128, 128
          %155 = vsyncadd %s149, %s154
          %s156 = smul.addr %s16, 128
          %s157 = scalar_lea.hbm %s0, %s156
          %s159 = sshll.u32 %s152, 4
          %s160 = int_to_ptr.vmem [resolvable:$true] %s159
          %162 = dma.hbm_to_vmem [thread:$0]  %s157, 128, %s160, %s149
        $region28: #{tpu_custom_call.1} parent=23 // pred_fallthru
          _
      $region24: #{tpu_custom_call.1} parent=5 // pred_fallthru
        _
      %p163 = scmp.le.s32.totalorder 1, %s16
      %p164 = scmp.lt.s32.totalorder %s16, 3
      %p165 = pnand %p163, %p164
      %p166 = pneg %p165
      // Predicated region
      $region29: #{tpu_custom_call.1} parent=5 // pred_check
        _
      $region30: #{tpu_custom_call.1} parent=5 // pred_check_branch
        %168 = sbr.rel (%p165) target = $region32
      $region31: #{tpu_custom_call.1} parent=5 // pred_region
        %s169 = ssub.s32 %s16, 1
        %s170 = sand.u32 %s29, 1
        %s171 = scalar_lea.sflag [#allocation3], %s170
        %s172 = sand.u32 %s29, 1
        %s173 = smul.addr %s172, 8
        %s174 = scalar_lea.vmem [#allocation2], %s173
        // Predicated region
        $region33: #{tpu_custom_call.1} parent=31 // pred_check
          %p175 = pneg %p42
        $region34: #{tpu_custom_call.1} parent=31 // pred_check_branch
          %177 = sbr.rel (%p175) target = $region36
        $region35: #{tpu_custom_call.1} parent=31 // pred_region
          %178 = dma.done %s171, 128
        $region36: #{tpu_custom_call.1} parent=31 // pred_fallthru
          _
        // Predicated region
        $region37: #{tpu_custom_call.1} parent=31 // pred_check
          %p179 = pneg %p63
        $region38: #{tpu_custom_call.1} parent=31 // pred_check_branch
          %181 = sbr.rel (%p179) target = $region40
        $region39: #{tpu_custom_call.1} parent=31 // pred_region
          %182 = dma.done [#allocation6], 6144
        $region40: #{tpu_custom_call.1} parent=31 // pred_fallthru
          _
        %s183 = sand.u32 %s29, 1
        %s184 = scalar_lea.sflag [#allocation3], %s183
        %s185 = sand.u32 %s29, 1
        %s186 = smul.addr %s185, 8
        %s187 = scalar_lea.vmem [#allocation2], %s186
        %p188 = pneg %p42
        %p189 = pneg %p39
        %p190 = pneg %p63
        %p191 = pneg %p60
        %p192 = pneg %p84
        %p193 = pneg %p81
        %p194 = pneg %p110
        %p195 = pneg %p107
        %s196 = sand.u32 %s97, 1
        %s197 = scalar_lea.sflag [#allocation4], %s196
        %s198 = sand.u32 %s97, 1
        %s199 = smul.addr %s198, 8
        %s200 = scalar_lea.vmem [#allocation7], %s199
        %v202 = vld [vmem:[%s174] sm:$0xff]
        %v203 = vpack.c.bf16 %v202, %v202
        %v204 = vld [vmem:[#allocation5] sm:$0xff]
        %v205 = vld [vmem:[#allocation5 + $0x8] sm:$0xff]
        %v206 = vld [vmem:[#allocation5 + $0x10] sm:$0xff]
        %v207 = vld [vmem:[#allocation5 + $0x18] sm:$0xff]
        %v208 = vld [vmem:[#allocation5 + $0x20] sm:$0xff]
        %v209 = vld [vmem:[#allocation5 + $0x28] sm:$0xff]
        %v210 = vld [vmem:[#allocation5 + $0x30] sm:$0xff]
        %v211 = vld [vmem:[#allocation5 + $0x38] sm:$0xff]
        %v212 = vld [vmem:[#allocation5 + $0x40] sm:$0xff]
        %v213 = vld [vmem:[#allocation5 + $0x48] sm:$0xff]
        %v214 = vld [vmem:[#allocation5 + $0x50] sm:$0xff]
        %v215 = vld [vmem:[#allocation5 + $0x58] sm:$0xff]
        %v216 = vld [vmem:[#allocation5 + $0x60] sm:$0xff]
        %v217 = vld [vmem:[#allocation5 + $0x68] sm:$0xff]
        %v218 = vld [vmem:[#allocation5 + $0x70] sm:$0xff]
        %v219 = vld [vmem:[#allocation5 + $0x78] sm:$0xff]
        %v236 = vunpack.c.l.b16 %v204
        %v237 = vunpack.c.h.b16 %v204
        %v238 = vunpack.c.l.b16 %v205
        %v239 = vunpack.c.h.b16 %v205
        %v240 = vunpack.c.l.b16 %v206
        %v241 = vunpack.c.h.b16 %v206
        %v242 = vunpack.c.l.b16 %v207
        %v243 = vunpack.c.h.b16 %v207
        %v244 = vunpack.c.l.b16 %v208
        %v245 = vunpack.c.h.b16 %v208
        %v246 = vunpack.c.l.b16 %v209
        %v247 = vunpack.c.h.b16 %v209
        %v248 = vunpack.c.l.b16 %v210
        %v249 = vunpack.c.h.b16 %v210
        %v250 = vunpack.c.l.b16 %v211
        %v251 = vunpack.c.h.b16 %v211
        %v252 = vunpack.c.l.b16 %v212
        %v253 = vunpack.c.h.b16 %v212
        %v254 = vunpack.c.l.b16 %v213
        %v255 = vunpack.c.h.b16 %v213
        %v256 = vunpack.c.l.b16 %v214
        %v257 = vunpack.c.h.b16 %v214
        %v258 = vunpack.c.l.b16 %v215
        %v259 = vunpack.c.h.b16 %v215
        %v260 = vunpack.c.l.b16 %v216
        %v261 = vunpack.c.h.b16 %v216
        %v262 = vunpack.c.l.b16 %v217
        %v263 = vunpack.c.h.b16 %v217
        %v264 = vunpack.c.l.b16 %v218
        %v265 = vunpack.c.h.b16 %v218
        %v266 = vunpack.c.l.b16 %v219
        %v267 = vunpack.c.h.b16 %v219
        %v268 = vpack.c.b16 %v238, %v236
        %v269 = vpack.c.b16 %v239, %v237
        %v270 = vpack.c.b16 %v242, %v240
        %v271 = vpack.c.b16 %v243, %v241
        %v272 = vpack.c.b16 %v246, %v244
        %v273 = vpack.c.b16 %v247, %v245
        %v274 = vpack.c.b16 %v250, %v248
        %v275 = vpack.c.b16 %v251, %v249
        %v276 = vpack.c.b16 %v254, %v252
        %v277 = vpack.c.b16 %v255, %v253
        %v278 = vpack.c.b16 %v258, %v256
        %v279 = vpack.c.b16 %v259, %v257
        %v280 = vpack.c.b16 %v262, %v260
        %v281 = vpack.c.b16 %v263, %v261
        %v282 = vpack.c.b16 %v266, %v264
        %v283 = vpack.c.b16 %v267, %v265
        %300 = vmatprep.subr.bf16.mxu0 %v269
        %301 = vmatpush1.bf16.msra.mxu0 %v268
        %302 = vmatprep.subr.bf16.mxu0 %v271
        %303 = vmatpush1.bf16.msra.mxu0 %v270
        %304 = vmatprep.subr.bf16.mxu0 %v273
        %305 = vmatpush1.bf16.msra.mxu0 %v272
        %306 = vmatprep.subr.bf16.mxu0 %v275
        %307 = vmatpush1.bf16.msra.mxu0 %v274
        %308 = vmatprep.subr.bf16.mxu0 %v277
        %309 = vmatpush1.bf16.msra.mxu0 %v276
        %310 = vmatprep.subr.bf16.mxu0 %v279
        %311 = vmatpush1.bf16.msra.mxu0 %v278
        %312 = vmatprep.subr.bf16.mxu0 %v281
        %313 = vmatpush1.bf16.msra.mxu0 %v280
        %314 = vmatprep.subr.bf16.mxu0 %v283
        %315 = vmatpush1.bf16.msra.mxu0 %v282
        %316 = vmatprep.subr.bf16.mxu0 0
        %317 = vmatpush1.bf16.msra.mxu0 0
        %318 = vmatprep.subr.bf16.mxu0 0
        %319 = vmatpush1.bf16.msra.mxu0 0
        %320 = vmatprep.subr.bf16.mxu0 0
        %321 = vmatpush1.bf16.msra.mxu0 0
        %322 = vmatprep.subr.bf16.mxu0 0
        %323 = vmatpush1.bf16.msra.mxu0 0
        %324 = vmatprep.subr.bf16.mxu0 0
        %325 = vmatpush1.bf16.msra.mxu0 0
        %326 = vmatprep.subr.bf16.mxu0 0
        %327 = vmatpush1.bf16.msra.mxu0 0
        %328 = vmatprep.subr.bf16.mxu0 0
        %329 = vmatpush1.bf16.msra.mxu0 0
        %330 = vmatprep.subr.bf16.mxu0 0
        %331 = vmatpush1.bf16.msra.mxu0 0
        %332 = vmatprep.mubr.bf16.mxu0 0
        %333 = vmatmul.mubr.bf16.gmra.mrb[0].mxu0 %v203
        %v334 = vpop.f32.mrb[0].mxu0
        %v335 = vadd.f32 0.0, %v334
        %v336 = vpop.f32.mrb[0].mxu0
        %v337 = vadd.f32 0.0, %v336
        %v338 = vpop.f32.mrb[0].mxu0
        %v339 = vpop.f32.mrb[0].mxu0
        %340 = vdwg.mxu0
        %v341 = vxor.u32 %v337, 2147483648
        %v342 = vmul.f32 %v341, 1.442695
        %v343 = vpow.pop %v342
        %v344 = vadd.f32 %v343, 1.0
        %v345 = vrcp.pop %v344
        %v346 = vmul.f32 1.0, %v345
        %v347 = vld [vmem:[%s2] sm:$0x1]
        %v349 = vlaneseq
        %v350 = vshrl.u32 %v349, 7
        %v351 = vsub.s32 0, %v350
        %v352 = vrot.slane %v347, %v351
        %v354 = vadd.f32 %v335, %v352
        %v355 = vmul.f32 %v202, %v354
        %v356 = vmul.f32 %v355, %v346
        %v357 = vadd.f32 %v356, %v202
        %v358 = vpack.c.bf16 %v357, %v357
        %s359 = scalar_lea.vmem [#allocation5], 128
        %v360 = vld [vmem:[%s359] sm:$0xff]
        %v361 = vld [vmem:[%s359 + $0x8] sm:$0xff]
        %v362 = vld [vmem:[%s359 + $0x10] sm:$0xff]
        %v363 = vld [vmem:[%s359 + $0x18] sm:$0xff]
        %v364 = vld [vmem:[%s359 + $0x20] sm:$0xff]
        %v365 = vld [vmem:[%s359 + $0x28] sm:$0xff]
        %v366 = vld [vmem:[%s359 + $0x30] sm:$0xff]
        %v367 = vld [vmem:[%s359 + $0x38] sm:$0xff]
        %v368 = vld [vmem:[%s359 + $0x40] sm:$0xff]
        %v369 = vld [vmem:[%s359 + $0x48] sm:$0xff]
        %v370 = vld [vmem:[%s359 + $0x50] sm:$0xff]
        %v371 = vld [vmem:[%s359 + $0x58] sm:$0xff]
        %v372 = vld [vmem:[%s359 + $0x60] sm:$0xff]
        %v373 = vld [vmem:[%s359 + $0x68] sm:$0xff]
        %v374 = vld [vmem:[%s359 + $0x70] sm:$0xff]
        %v375 = vld [vmem:[%s359 + $0x78] sm:$0xff]
        %v392 = vunpack.c.l.b16 %v360
        %v393 = vunpack.c.h.b16 %v360
        %v394 = vunpack.c.l.b16 %v361
        %v395 = vunpack.c.h.b16 %v361
        %v396 = vunpack.c.l.b16 %v362
        %v397 = vunpack.c.h.b16 %v362
        %v398 = vunpack.c.l.b16 %v363
        %v399 = vunpack.c.h.b16 %v363
        %v400 = vunpack.c.l.b16 %v364
        %v401 = vunpack.c.h.b16 %v364
        %v402 = vunpack.c.l.b16 %v365
        %v403 = vunpack.c.h.b16 %v365
        %v404 = vunpack.c.l.b16 %v366
        %v405 = vunpack.c.h.b16 %v366
        %v406 = vunpack.c.l.b16 %v367
        %v407 = vunpack.c.h.b16 %v367
        %v408 = vunpack.c.l.b16 %v368
        %v409 = vunpack.c.h.b16 %v368
        %v410 = vunpack.c.l.b16 %v369
        %v411 = vunpack.c.h.b16 %v369
        %v412 = vunpack.c.l.b16 %v370
        %v413 = vunpack.c.h.b16 %v370
        %v414 = vunpack.c.l.b16 %v371
        %v415 = vunpack.c.h.b16 %v371
        %v416 = vunpack.c.l.b16 %v372
        %v417 = vunpack.c.h.b16 %v372
        %v418 = vunpack.c.l.b16 %v373
        %v419 = vunpack.c.h.b16 %v373
        %v420 = vunpack.c.l.b16 %v374
        %v421 = vunpack.c.h.b16 %v374
        %v422 = vunpack.c.l.b16 %v375
        %v423 = vunpack.c.h.b16 %v375
        %v424 = vpack.c.b16 %v394, %v392
        %v425 = vpack.c.b16 %v395, %v393
        %v426 = vpack.c.b16 %v398, %v396
        %v427 = vpack.c.b16 %v399, %v397
        %v428 = vpack.c.b16 %v402, %v400
        %v429 = vpack.c.b16 %v403, %v401
        %v430 = vpack.c.b16 %v406, %v404
        %v431 = vpack.c.b16 %v407, %v405
        %v432 = vpack.c.b16 %v410, %v408
        %v433 = vpack.c.b16 %v411, %v409
        %v434 = vpack.c.b16 %v414, %v412
        %v435 = vpack.c.b16 %v415, %v413
        %v436 = vpack.c.b16 %v418, %v416
        %v437 = vpack.c.b16 %v419, %v417
        %v438 = vpack.c.b16 %v422, %v420
        %v439 = vpack.c.b16 %v423, %v421
        %456 = vmatprep.subr.bf16.mxu0 %v425
        %457 = vmatpush1.bf16.msra.mxu0 %v424
        %458 = vmatprep.subr.bf16.mxu0 %v427
        %459 = vmatpush1.bf16.msra.mxu0 %v426
        %460 = vmatprep.subr.bf16.mxu0 %v429
        %461 = vmatpush1.bf16.msra.mxu0 %v428
        %462 = vmatprep.subr.bf16.mxu0 %v431
        %463 = vmatpush1.bf16.msra.mxu0 %v430
        %464 = vmatprep.subr.bf16.mxu0 %v433
        %465 = vmatpush1.bf16.msra.mxu0 %v432
        %466 = vmatprep.subr.bf16.mxu0 %v435
        %467 = vmatpush1.bf16.msra.mxu0 %v434
        %468 = vmatprep.subr.bf16.mxu0 %v437
        %469 = vmatpush1.bf16.msra.mxu0 %v436
        %470 = vmatprep.subr.bf16.mxu0 %v439
        %471 = vmatpush1.bf16.msra.mxu0 %v438
        %472 = vmatprep.subr.bf16.mxu0 0
        %473 = vmatpush1.bf16.msra.mxu0 0
        %474 = vmatprep.subr.bf16.mxu0 0
        %475 = vmatpush1.bf16.msra.mxu0 0
        %476 = vmatprep.subr.bf16.mxu0 0
        %477 = vmatpush1.bf16.msra.mxu0 0
        %478 = vmatprep.subr.bf16.mxu0 0
        %479 = vmatpush1.bf16.msra.mxu0 0
        %480 = vmatprep.subr.bf16.mxu0 0
        %481 = vmatpush1.bf16.msra.mxu0 0
        %482 = vmatprep.subr.bf16.mxu0 0
        %483 = vmatpush1.bf16.msra.mxu0 0
        %484 = vmatprep.subr.bf16.mxu0 0
        %485 = vmatpush1.bf16.msra.mxu0 0
        %486 = vmatprep.subr.bf16.mxu0 0
        %487 = vmatpush1.bf16.msra.mxu0 0
        %488 = vmatprep.mubr.bf16.mxu0 0
        %489 = vmatmul.mubr.bf16.gmra.mrb[0].mxu0 %v358
        %v490 = vpop.f32.mrb[0].mxu0
        %v491 = vadd.f32 0.0, %v490
        %v492 = vpop.f32.mrb[0].mxu0
        %v493 = vadd.f32 0.0, %v492
        %v494 = vpop.f32.mrb[0].mxu0
        %v495 = vpop.f32.mrb[0].mxu0
        %496 = vdwg.mxu0
        %v497 = vxor.u32 %v493, 2147483648
        %v498 = vmul.f32 %v497, 1.442695
        %v499 = vpow.pop %v498
        %v500 = vadd.f32 %v499, 1.0
        %v501 = vrcp.pop %v500
        %v502 = vmul.f32 1.0, %v501
        %s503 = scalar_lea.vmem %s2, 1
        %v504 = vld [vmem:[%s503] sm:$0x1]
        %v506 = vlaneseq
        %v507 = vshrl.u32 %v506, 7
        %v508 = vsub.s32 0, %v507
        %v509 = vrot.slane %v504, %v508
        %v511 = vadd.f32 %v491, %v509
        %v512 = vmul.f32 %v202, %v511
        %v513 = vmul.f32 %v512, %v502
        %v514 = vadd.f32 %v513, %v357
        %v515 = vpack.c.bf16 %v514, %v514
        %s516 = scalar_lea.vmem [#allocation5], 256
        %v517 = vld [vmem:[%s516] sm:$0xff]
        %v518 = vld [vmem:[%s516 + $0x8] sm:$0xff]
        %v519 = vld [vmem:[%s516 + $0x10] sm:$0xff]
        %v520 = vld [vmem:[%s516 + $0x18] sm:$0xff]
        %v521 = vld [vmem:[%s516 + $0x20] sm:$0xff]
        %v522 = vld [vmem:[%s516 + $0x28] sm:$0xff]
        %v523 = vld [vmem:[%s516 + $0x30] sm:$0xff]
        %v524 = vld [vmem:[%s516 + $0x38] sm:$0xff]
        %v525 = vld [vmem:[%s516 + $0x40] sm:$0xff]
        %v526 = vld [vmem:[%s516 + $0x48] sm:$0xff]
        %v527 = vld [vmem:[%s516 + $0x50] sm:$0xff]
        %v528 = vld [vmem:[%s516 + $0x58] sm:$0xff]
        %v529 = vld [vmem:[%s516 + $0x60] sm:$0xff]
        %v530 = vld [vmem:[%s516 + $0x68] sm:$0xff]
        %v531 = vld [vmem:[%s516 + $0x70] sm:$0xff]
        %v532 = vld [vmem:[%s516 + $0x78] sm:$0xff]
        %v549 = vunpack.c.l.b16 %v517
        %v550 = vunpack.c.h.b16 %v517
        %v551 = vunpack.c.l.b16 %v518
        %v552 = vunpack.c.h.b16 %v518
        %v553 = vunpack.c.l.b16 %v519
        %v554 = vunpack.c.h.b16 %v519
        %v555 = vunpack.c.l.b16 %v520
        %v556 = vunpack.c.h.b16 %v520
        %v557 = vunpack.c.l.b16 %v521
        %v558 = vunpack.c.h.b16 %v521
        %v559 = vunpack.c.l.b16 %v522
        %v560 = vunpack.c.h.b16 %v522
        %v561 = vunpack.c.l.b16 %v523
        %v562 = vunpack.c.h.b16 %v523
        %v563 = vunpack.c.l.b16 %v524
        %v564 = vunpack.c.h.b16 %v524
        %v565 = vunpack.c.l.b16 %v525
        %v566 = vunpack.c.h.b16 %v525
        %v567 = vunpack.c.l.b16 %v526
        %v568 = vunpack.c.h.b16 %v526
        %v569 = vunpack.c.l.b16 %v527
        %v570 = vunpack.c.h.b16 %v527
        %v571 = vunpack.c.l.b16 %v528
        %v572 = vunpack.c.h.b16 %v528
        %v573 = vunpack.c.l.b16 %v529
        %v574 = vunpack.c.h.b16 %v529
        %v575 = vunpack.c.l.b16 %v530
        %v576 = vunpack.c.h.b16 %v530
        %v577 = vunpack.c.l.b16 %v531
        %v578 = vunpack.c.h.b16 %v531
        %v579 = vunpack.c.l.b16 %v532
        %v580 = vunpack.c.h.b16 %v532
        %v581 = vpack.c.b16 %v551, %v549
        %v582 = vpack.c.b16 %v552, %v550
        %v583 = vpack.c.b16 %v555, %v553
        %v584 = vpack.c.b16 %v556, %v554
        %v585 = vpack.c.b16 %v559, %v557
        %v586 = vpack.c.b16 %v560, %v558
        %v587 = vpack.c.b16 %v563, %v561
        %v588 = vpack.c.b16 %v564, %v562
        %v589 = vpack.c.b16 %v567, %v565
        %v590 = vpack.c.b16 %v568, %v566
        %v591 = vpack.c.b16 %v571, %v569
        %v592 = vpack.c.b16 %v572, %v570
        %v593 = vpack.c.b16 %v575, %v573
        %v594 = vpack.c.b16 %v576, %v574
        %v595 = vpack.c.b16 %v579, %v577
        %v596 = vpack.c.b16 %v580, %v578
        %613 = vmatprep.subr.bf16.mxu0 %v582
        %614 = vmatpush1.bf16.msra.mxu0 %v581
        %615 = vmatprep.subr.bf16.mxu0 %v584
        %616 = vmatpush1.bf16.msra.mxu0 %v583
        %617 = vmatprep.subr.bf16.mxu0 %v586
        %618 = vmatpush1.bf16.msra.mxu0 %v585
        %619 = vmatprep.subr.bf16.mxu0 %v588
        %620 = vmatpush1.bf16.msra.mxu0 %v587
        %621 = vmatprep.subr.bf16.mxu0 %v590
        %622 = vmatpush1.bf16.msra.mxu0 %v589
        %623 = vmatprep.subr.bf16.mxu0 %v592
        %624 = vmatpush1.bf16.msra.mxu0 %v591
        %625 = vmatprep.subr.bf16.mxu0 %v594
        %626 = vmatpush1.bf16.msra.mxu0 %v593
        %627 = vmatprep.subr.bf16.mxu0 %v596
        %628 = vmatpush1.bf16.msra.mxu0 %v595
        %629 = vmatprep.subr.bf16.mxu0 0
        %630 = vmatpush1.bf16.msra.mxu0 0
        %631 = vmatprep.subr.bf16.mxu0 0
        %632 = vmatpush1.bf16.msra.mxu0 0
        %633 = vmatprep.subr.bf16.mxu0 0
        %634 = vmatpush1.bf16.msra.mxu0 0
        %635 = vmatprep.subr.bf16.mxu0 0
        %636 = vmatpush1.bf16.msra.mxu0 0
        %637 = vmatprep.subr.bf16.mxu0 0
        %638 = vmatpush1.bf16.msra.mxu0 0
        %639 = vmatprep.subr.bf16.mxu0 0
        %640 = vmatpush1.bf16.msra.mxu0 0
        %641 = vmatprep.subr.bf16.mxu0 0
        %642 = vmatpush1.bf16.msra.mxu0 0
        %643 = vmatprep.subr.bf16.mxu0 0
        %644 = vmatpush1.bf16.msra.mxu0 0
        %645 = vmatprep.mubr.bf16.mxu0 0
        %646 = vmatmul.mubr.bf16.gmra.mrb[0].mxu0 %v515
        %v647 = vpop.f32.mrb[0].mxu0
        %v648 = vadd.f32 0.0, %v647
        %v649 = vpop.f32.mrb[0].mxu0
        %v650 = vadd.f32 0.0, %v649
        %v651 = vpop.f32.mrb[0].mxu0
        %v652 = vpop.f32.mrb[0].mxu0
        %653 = vdwg.mxu0
        %v654 = vxor.u32 %v650, 2147483648
        %v655 = vmul.f32 %v654, 1.442695
        %v656 = vpow.pop %v655
        %v657 = vadd.f32 %v656, 1.0
        %v658 = vrcp.pop %v657
        %v659 = vmul.f32 1.0, %v658
        %s660 = scalar_lea.vmem %s2, 2
        %v661 = vld [vmem:[%s660] sm:$0x1]
        %v663 = vlaneseq
        %v664 = vshrl.u32 %v663, 7
        %v665 = vsub.s32 0, %v664
        %v666 = vrot.slane %v661, %v665
        %v668 = vadd.f32 %v648, %v666
        %v669 = vmul.f32 %v202, %v668
        %v670 = vmul.f32 %v669, %v659
        %v671 = vadd.f32 %v670, %v514
        %672 = vst [vmem:[%s200] sm:$0xff] %v671
        %s673 = sand.u32 %s97, 1
        %s674 = scalar_lea.sflag [#allocation4], %s673
        %s675 = sand.u32 %s97, 1
        %s676 = smul.addr %s675, 8
        %s677 = scalar_lea.vmem [#allocation7], %s676
        // Predicated region
        $region41: #{tpu_custom_call.1} parent=31 // pred_check
          %p678 = pneg %p107
        $region42: #{tpu_custom_call.1} parent=31 // pred_check_branch
          %680 = sbr.rel (%p678) target = $region44
        $region43: #{tpu_custom_call.1} parent=31 // pred_region
          %s682 = ssub.s32 128, 128
          %683 = vsyncadd %s674, %s682
          %s684 = smul.addr %s21, 128
          %s685 = scalar_lea.hbm %s3, %s684
          %s687 = sshll.u32 %s677, 4
          %s688 = int_to_ptr.vmem [resolvable:$true] %s687
          %690 = dma.vmem_to_hbm [thread:$0]  %s688, 128, %s685, %s674
        $region44: #{tpu_custom_call.1} parent=31 // pred_fallthru
          _
      $region32: #{tpu_custom_call.1} parent=5 // pred_fallthru
        _
      %p691 = scmp.le.s32.totalorder 2, %s16
      // Predicated region
      $region45: #{tpu_custom_call.1} parent=5 // pred_check
        %p692 = pneg %p691
      $region46: #{tpu_custom_call.1} parent=5 // pred_check_branch
        %694 = sbr.rel (%p692) target = $region48
      $region47: #{tpu_custom_call.1} parent=5 // pred_region
        %s695 = ssub.s32 %s16, 2
        // Predicated region
        $region49: #{tpu_custom_call.1} parent=47 // pred_check
          %p696 = pneg %p113
        $region50: #{tpu_custom_call.1} parent=47 // pred_check_branch
          %698 = sbr.rel (%p696) target = $region52
        $region51: #{tpu_custom_call.1} parent=47 // pred_region
          %s699 = sand.u32 %s98, 1
          %s700 = scalar_lea.sflag [#allocation4], %s699
          %s701 = sand.u32 %s98, 1
          %s702 = smul.addr %s701, 8
          %s703 = scalar_lea.vmem [#allocation7], %s702
          %704 = dma.done %s700, 128
        $region52: #{tpu_custom_call.1} parent=47 // pred_fallthru
          _
      $region48: #{tpu_custom_call.1} parent=5 // pred_fallthru
        _
    $region6: #{tpu_custom_call.1} parent=1 // loop_footer
      %s20 = sadd.s32 1, %s16
    $region7: #{tpu_custom_call.1} parent=1 // loop_footer_branch
      %15 = sbr.rel target = $region3
    $region8: #{tpu_custom_call.1} parent=1 // loop_exit
      _
    %705 = vsyncpa [#allocation3], 1
    %s706 = scalar_lea.sflag [#allocation3], 1
    %707 = vsyncpa %s706, 1
    %708 = vsyncpa [#allocation6], 1
    %709 = vsyncpa [#allocation4], 1
    %s710 = scalar_lea.sflag [#allocation4], 1
    %711 = vsyncpa %s710, 1

</llo_original>
